<compile_context>
chip_gen: v6e
topology: v6e:2x2x1
jax: 0.10.0
libtpu: 0.0.40
codegen_flags: <defaults>
</compile_context>

<pallas_src>
import jax
import jax.numpy as jnp
from jax.experimental import pallas as pl
from jax.experimental.pallas import tpu as pltpu


D_IN = 784
H1, H2, OUT = 300, 100, 10          # logical (PyTorch) widths
H1P, H2P, OUTP = 384, 128, 128      # lane-padded widths
TB_MAX = 1024                       # batch tile (sized well under v7x 64 MiB VMEM)


def _round_up(n, m):
    return ((n + m - 1) // m) * m


def lenet_kernel(x_ref, w1_ref, w2_ref, w3_ref, b_ref, o_ref):
    # x tile is bf16; weights are bf16; biases + all epilogue math stay f32.
    x = x_ref[...]

    b1 = b_ref[:, 0:H1P]
    b2 = b_ref[:, H1P:H1P + H2P]
    b3 = b_ref[:, H1P + H2P:H1P + H2P + OUTP]

    # fc1 + ReLU
    h1 = jnp.dot(x, w1_ref[...], preferred_element_type=jnp.float32) + b1
    h1 = jnp.maximum(h1, 0.0)
    # fc2 + ReLU
    h2 = jnp.dot(h1.astype(jnp.bfloat16), w2_ref[...],
                 preferred_element_type=jnp.float32) + b2
    h2 = jnp.maximum(h2, 0.0)
    # fc3
    logits = jnp.dot(h2.astype(jnp.bfloat16), w3_ref[...],
                     preferred_element_type=jnp.float32) + b3

    # Mask padded logit columns before the log_softmax reductions.
    col = jax.lax.broadcasted_iota(jnp.int32, logits.shape, 1)
    logits = jnp.where(col < OUT, logits, -jnp.inf)

    # log_softmax along dim=1 (numerically stable).
    m = jnp.max(logits, axis=1, keepdims=True)
    shifted = logits - m
    lse = jnp.log(jnp.sum(jnp.exp(shifted), axis=1, keepdims=True))
    o_ref[...] = (shifted - lse).astype(o_ref.dtype)


def prepare_params(params):
    """Pad to lane-dense widths, cast weights to bf16, concat biases (f32)."""
    w1, b1, w2, b2, w3, b3 = params
    w1p = jnp.pad(w1, ((0, 0), (0, H1P - H1))).astype(jnp.bfloat16)
    w2p = jnp.pad(w2, ((0, H1P - H1), (0, H2P - H2))).astype(jnp.bfloat16)
    w3p = jnp.pad(w3, ((0, H2P - H2), (0, OUTP - OUT))).astype(jnp.bfloat16)
    b_all = jnp.concatenate(
        [
            jnp.pad(b1, ((0, 0), (0, H1P - H1))),
            jnp.pad(b2, ((0, 0), (0, H2P - H2))),
            jnp.pad(b3, ((0, 0), (0, OUTP - OUT))),
        ],
        axis=1,
    ).astype(jnp.float32)
    return w1p, w2p, w3p, b_all


def lenet_300_100_forward(x, packed_params):
    """x: [B, 1, 28, 28] or [B, 784]. Returns [B, 10] f32 log-probs."""
    w1p, w2p, w3p, b_all = packed_params

    x2d = x.reshape(-1, D_IN).astype(jnp.bfloat16)
    B = x2d.shape[0]

    # Batch tile: multiple of 16 (bf16 sublane packing), capped at TB_MAX.
    TB = min(TB_MAX, _round_up(B, 16))
    Bp = pl.cdiv(B, TB) * TB
    if Bp != B:
        x2d = jnp.pad(x2d, ((0, Bp - B), (0, 0)))

    weight_bytes = 2 * (D_IN * H1P + H1P * H2P + H2P * OUTP) + 4 * (H1P + H2P + OUTP)
    out = pl.pallas_call(
        lenet_kernel,
        out_shape=jax.ShapeDtypeStruct((Bp, OUTP), jnp.float32),
        grid=(Bp // TB,),
        in_specs=[
            pl.BlockSpec((TB, D_IN), lambda i: (i, 0)),          # streamed x
            pl.BlockSpec((D_IN, H1P), lambda i: (0, 0)),         # resident weights
            pl.BlockSpec((H1P, H2P), lambda i: (0, 0)),
            pl.BlockSpec((H2P, OUTP), lambda i: (0, 0)),
            pl.BlockSpec((1, H1P + H2P + OUTP), lambda i: (0, 0)),  # fused biases
        ],
        out_specs=pl.BlockSpec((TB, OUTP), lambda i: (i, 0)),
        compiler_params=pltpu.CompilerParams(
            dimension_semantics=("parallel",),
            vmem_limit_bytes=32 * 1024 * 1024,
        ),
        cost_estimate=pl.CostEstimate(
            flops=2 * Bp * (D_IN * H1P + H1P * H2P + H2P * OUTP),
            transcendentals=Bp * (OUTP + 1),
            bytes_accessed=Bp * D_IN * 2 + weight_bytes + Bp * OUTP * 4,
        ),
    )(x2d, w1p, w2p, w3p, b_all)

    return out[:B, :OUT]


def init_params(key):
    """Deterministic init mimicking nn.Linear's U(-1/sqrt(fan_in), 1/sqrt(fan_in)).

    Weights are stored transposed vs PyTorch ([in, out]) so forward is x @ W."""
    dims = [(D_IN, H1), (H1, H2), (H2, OUT)]
    params = []
    for fan_in, fan_out in dims:
        kw, kb, key = jax.random.split(key, 3)
        bound = 1.0 / (fan_in ** 0.5)
        w = jax.random.uniform(kw, (fan_in, fan_out), jnp.float32, -bound, bound)
        b = jax.random.uniform(kb, (1, fan_out), jnp.float32, -bound, bound)
        params += [w, b]
    return tuple(params)


def ref_forward(x, params):
    """Plain-JAX reference matching the kernel's bf16-matmul / f32-epilogue math."""
    w1, b1, w2, b2, w3, b3 = params
    bf = lambda a: a.astype(jnp.bfloat16).astype(jnp.float32)
    x2d = bf(x.reshape(-1, D_IN))
    h1 = jnp.maximum(x2d @ bf(w1) + b1, 0.0)
    h2 = jnp.maximum(bf(h1) @ bf(w2) + b2, 0.0)
    logits = bf(h2) @ bf(w3) + b3
    return jax.nn.log_softmax(logits, axis=1)


if __name__ == "__main__":
    key = jax.random.PRNGKey(0)
    k_x, k_p = jax.random.split(key)
    # Small batch of MNIST-shaped inputs (NCHW), consistent with view(-1, 784).
    x = jax.random.normal(k_x, (2, 1, 28, 28), dtype=jnp.float32)
    params = init_params(k_p)
    packed = prepare_params(params)

    out = lenet_300_100_forward(x, packed)
    out = jax.block_until_ready(out)

    ref = ref_forward(x, params)
    assert out.shape == (2, 10), out.shape
    assert bool(jnp.all(jnp.isfinite(out)))
    assert jnp.allclose(out, ref, atol=5e-3, rtol=5e-3), (
        float(jnp.max(jnp.abs(out - ref))))

    print("KERNEL_OK")
</pallas_src>

<mosaic_0001>
module attributes {stable_mosaic.version = 11 : i64} {
  func.func @lenet_kernel(%arg0: i32, %arg1: memref<16x784xbf16, #tpu.memory_space<vmem>>, %arg2: memref<784x384xbf16, #tpu.memory_space<vmem>>, %arg3: memref<384x128xbf16, #tpu.memory_space<vmem>>, %arg4: memref<128x128xbf16, #tpu.memory_space<vmem>>, %arg5: memref<1x640xf32, #tpu.memory_space<vmem>>, %arg6: memref<16x128xf32, #tpu.memory_space<vmem>>) attributes {dimension_semantics = [#tpu.dimension_semantics<parallel>], iteration_bounds = array<i64: 1>, scalar_prefetch = 0 : i64, scratch_operands = 0 : i64, tpu.core_type = #tpu.core_type<tc>, window_params = [{transform_indices = @transform_0, window_bounds = array<i64: 16, 784>}, {pipeline_mode = #tpu.pipeline_mode<synchronous>, transform_indices = @transform_1, window_bounds = array<i64: 784, 384>}, {pipeline_mode = #tpu.pipeline_mode<synchronous>, transform_indices = @transform_2, window_bounds = array<i64: 384, 128>}, {pipeline_mode = #tpu.pipeline_mode<synchronous>, transform_indices = @transform_3, window_bounds = array<i64: 128, 128>}, {pipeline_mode = #tpu.pipeline_mode<synchronous>, transform_indices = @transform_4, window_bounds = array<i64: 1, 640>}, {transform_indices = @transform_5, window_bounds = array<i64: 16, 128>}]} {
    %c0 = arith.constant 0 : index
    %c0_0 = arith.constant 0 : index
    %0 = vector.load %arg1[%c0, %c0_0] : memref<16x784xbf16, #tpu.memory_space<vmem>>, vector<16x784xbf16>
    %c0_1 = arith.constant 0 : index
    %c0_2 = arith.constant 0 : index
    %1 = vector.load %arg5[%c0_1, %c0_2] : memref<1x640xf32, #tpu.memory_space<vmem>>, vector<1x384xf32>
    %c0_3 = arith.constant 0 : index
    %c384 = arith.constant 384 : index
    %2 = vector.load %arg5[%c0_3, %c384] : memref<1x640xf32, #tpu.memory_space<vmem>>, vector<1x128xf32>
    %c0_4 = arith.constant 0 : index
    %c512 = arith.constant 512 : index
    %3 = vector.load %arg5[%c0_4, %c512] : memref<1x640xf32, #tpu.memory_space<vmem>>, vector<1x128xf32>
    %c0_5 = arith.constant 0 : index
    %c0_6 = arith.constant 0 : index
    %4 = vector.load %arg2[%c0_5, %c0_6] : memref<784x384xbf16, #tpu.memory_space<vmem>>, vector<784x384xbf16>
    %cst = arith.constant dense<0.000000e+00> : vector<16x384xf32>
    %5 = tpu.matmul %0, %4, %cst {dimension_numbers = #tpu.dot_dimension_numbers<[1], [0], [0], [1], [0, 0, 1, 1], [], []>} : vector<16x784xbf16>, vector<784x384xbf16>, vector<16x384xf32> -> vector<16x384xf32>
    %6 = vector.broadcast %1 : vector<1x384xf32> to vector<16x384xf32>
    %7 = arith.addf %5, %6 : vector<16x384xf32>
    %cst_7 = arith.constant 0.000000e+00 : f32
    %8 = vector.broadcast %cst_7 : f32 to vector<16x384xf32>
    %9 = arith.maximumf %7, %8 : vector<16x384xf32>
    %10 = arith.truncf %9 : vector<16x384xf32> to vector<16x384xbf16>
    %c0_8 = arith.constant 0 : index
    %c0_9 = arith.constant 0 : index
    %11 = vector.load %arg3[%c0_8, %c0_9] : memref<384x128xbf16, #tpu.memory_space<vmem>>, vector<384x128xbf16>
    %cst_10 = arith.constant dense<0.000000e+00> : vector<16x128xf32>
    %12 = tpu.matmul %10, %11, %cst_10 {dimension_numbers = #tpu.dot_dimension_numbers<[1], [0], [0], [1], [0, 0, 1, 1], [], []>} : vector<16x384xbf16>, vector<384x128xbf16>, vector<16x128xf32> -> vector<16x128xf32>
    %13 = vector.broadcast %2 : vector<1x128xf32> to vector<16x128xf32>
    %14 = arith.addf %12, %13 : vector<16x128xf32>
    %cst_11 = arith.constant 0.000000e+00 : f32
    %15 = vector.broadcast %cst_11 : f32 to vector<16x128xf32>
    %16 = arith.maximumf %14, %15 : vector<16x128xf32>
    %17 = arith.truncf %16 : vector<16x128xf32> to vector<16x128xbf16>
    %c0_12 = arith.constant 0 : index
    %c0_13 = arith.constant 0 : index
    %18 = vector.load %arg4[%c0_12, %c0_13] : memref<128x128xbf16, #tpu.memory_space<vmem>>, vector<128x128xbf16>
    %cst_14 = arith.constant dense<0.000000e+00> : vector<16x128xf32>
    %19 = tpu.matmul %17, %18, %cst_14 {dimension_numbers = #tpu.dot_dimension_numbers<[1], [0], [0], [1], [0, 0, 1, 1], [], []>} : vector<16x128xbf16>, vector<128x128xbf16>, vector<16x128xf32> -> vector<16x128xf32>
    %20 = vector.broadcast %3 : vector<1x128xf32> to vector<16x128xf32>
    %21 = arith.addf %19, %20 : vector<16x128xf32>
    %22 = tpu.iota {dimensions = array<i32: 1>} : vector<16x128xi32>
    %c10_i32 = arith.constant 10 : i32
    %23 = vector.broadcast %c10_i32 : i32 to vector<16x128xi32>
    %24 = arith.cmpi slt, %22, %23 : vector<16x128xi32>
    %cst_15 = arith.constant 0xFF800000 : f32
    %25 = vector.broadcast %cst_15 : f32 to vector<16x128xf32>
    %26 = arith.select %24, %21, %25 : vector<16x128xi1>, vector<16x128xf32>
    %cst_16 = arith.constant dense<0xFF800000> : vector<16xf32>
    %27 = vector.multi_reduction <maximumf>, %26, %cst_16 [1] : vector<16x128xf32> to vector<16xf32>
    %28 = vector.shape_cast %27 : vector<16xf32> to vector<16x1xf32>
    %29 = vector.broadcast %28 : vector<16x1xf32> to vector<16x128xf32>
    %30 = arith.subf %26, %29 : vector<16x128xf32>
    %31 = math.exp %30 : vector<16x128xf32>
    %cst_17 = arith.constant dense<0.000000e+00> : vector<16xf32>
    %32 = vector.multi_reduction <add>, %31, %cst_17 [1] : vector<16x128xf32> to vector<16xf32>
    %33 = vector.shape_cast %32 : vector<16xf32> to vector<16x1xf32>
    %34 = math.log %33 : vector<16x1xf32>
    %35 = vector.broadcast %34 : vector<16x1xf32> to vector<16x128xf32>
    %36 = arith.subf %30, %35 : vector<16x128xf32>
    %c0_18 = arith.constant 0 : index
    %c0_19 = arith.constant 0 : index
    %37 = vector.load %arg6[%c0_18, %c0_19] : memref<16x128xf32, #tpu.memory_space<vmem>>, vector<16x128xf32>
    tpu.vector_store %arg6[%c0_18, %c0_19], %36 {strides = array<i32>} : memref<16x128xf32, #tpu.memory_space<vmem>>, vector<16x128xf32>,
    return
  }
  func.func @transform_0(%arg0: i32) -> (i32, i32) {
    %c0_i32 = arith.constant 0 : i32
    %c0_i32_0 = arith.constant 0 : i32
    return %arg0, %c0_i32 : i32, i32
  }
  func.func @transform_1(%arg0: i32) -> (i32, i32) {
    %c0_i32 = arith.constant 0 : i32
    %c0_i32_0 = arith.constant 0 : i32
    %c0_i32_1 = arith.constant 0 : i32
    return %c0_i32, %c0_i32_0 : i32, i32
  }
  func.func @transform_2(%arg0: i32) -> (i32, i32) {
    %c0_i32 = arith.constant 0 : i32
    %c0_i32_0 = arith.constant 0 : i32
    %c0_i32_1 = arith.constant 0 : i32
    return %c0_i32, %c0_i32_0 : i32, i32
  }
  func.func @transform_3(%arg0: i32) -> (i32, i32) {
    %c0_i32 = arith.constant 0 : i32
    %c0_i32_0 = arith.constant 0 : i32
    %c0_i32_1 = arith.constant 0 : i32
    return %c0_i32, %c0_i32_0 : i32, i32
  }
  func.func @transform_4(%arg0: i32) -> (i32, i32) {
    %c0_i32 = arith.constant 0 : i32
    %c0_i32_0 = arith.constant 0 : i32
    %c0_i32_1 = arith.constant 0 : i32
    return %c0_i32, %c0_i32_0 : i32, i32
  }
  func.func @transform_5(%arg0: i32) -> (i32, i32) {
    %c0_i32 = arith.constant 0 : i32
    %c0_i32_0 = arith.constant 0 : i32
    return %arg0, %c0_i32 : i32, i32
  }
}

</mosaic_0001>

<llo_original>
// kernel: tpu_custom_call.1
$region0: #{tpu_custom_call.1}
  #allocation0 [shape = 'u32[]', space=smem, size = 0x4, offset = 0x4, fixed_abs, tag = 'smem constant byte address 0x4 - core index']
  #allocation1 [shape = 'u32[144,128]{1,0:T(1,128)}', space=vmem, size = 0x12000, scoped, tag = 'internal scratch']
  %s0 = inlined_call_operand.hbm [shape: bf16[16,784], index: 0, kind: input, shape index: {}]
  %s1 = inlined_call_operand.hbm [shape: bf16[784,384], index: 1, kind: input, shape index: {}]
  %s2 = inlined_call_operand.hbm [shape: bf16[384,128], index: 2, kind: input, shape index: {}]
  %s3 = inlined_call_operand.hbm [shape: bf16[128,128], index: 3, kind: input, shape index: {}]
  %s4 = inlined_call_operand.vmem [shape: f32[1,640], index: 4, kind: input, shape index: {}]
  %s5 = inlined_call_operand.hbm [shape: f32[16,128], index: 5, kind: output, shape index: {}]
  %s6 = sld [smem:[#allocation0]]
  $region46: #{tpu_custom_call.1} parent=0
    _
  %s8 = ssub.s32 1, %s6
  %s9 = scalar_select 0, %s8, %s6
  $region1: #{tpu_custom_call.1} parent=0
    #allocation2 [shape = 'u8[28672]{0}', space=vmem, size = 0x7000, scoped, tag = 'input window, operand 0, single buffered']
    #allocation3 [shape = 's32[1]{0}', space=sflag, size = 0x4, scoped, tag = 'scoped memory for tpu_custom_call.1']
    #allocation4 [shape = 's32[1]{0}', space=sflag, size = 0x4, scoped, tag = 'scoped memory for tpu_custom_call.1']
    #allocation5 [shape = 'u8[602112]{0}', space=vmem, size = 0x93000, scoped, tag = 'input window, operand 1, single buffered']
    #allocation6 [shape = 's32[1]{0}', space=sflag, size = 0x4, scoped, tag = 'scoped memory for tpu_custom_call.1']
    #allocation7 [shape = 'u8[98304]{0}', space=vmem, size = 0x18000, scoped, tag = 'input window, operand 2, single buffered']
    #allocation8 [shape = 'u8[32768]{0}', space=vmem, size = 0x8000, scoped, tag = 'input window, operand 3, single buffered']
    #allocation9 [shape = 's32[1]{0}', space=sflag, size = 0x4, scoped, tag = 'scoped memory for tpu_custom_call.1']
    #allocation10 [shape = 'u8[8192]{0}', space=vmem, size = 0x2000, scoped, tag = 'output window, operand 0, single buffered']
    %10 = vsyncpa [#allocation3], 0
    %11 = vsyncpa [#allocation6], 0
    %12 = vsyncpa [#allocation9], 0
    %13 = vsyncpa [#allocation4], 0
    // Predicated region
    $region2: #{tpu_custom_call.1} parent=1 // pred_check
      _
    $region3: #{tpu_custom_call.1} parent=1 // pred_check_branch
      %15 = sbr.rel (0) target = $region5
    $region4: #{tpu_custom_call.1} parent=1 // pred_region
      %s17 = ssub.s32 896, 896
      %18 = vsyncadd [#allocation3], %s17
      %s19 = sshll.u32 [#allocation2], 4
      %s20 = int_to_ptr.vmem [resolvable:$true] %s19
      %25 = dma.hbm_to_vmem [thread:$0]  %s0, 896, %s20, [#allocation3], 448, 448, 28
    $region5: #{tpu_custom_call.1} parent=1 // pred_fallthru
      _
    // Predicated region
    $region6: #{tpu_custom_call.1} parent=1 // pred_check
      _
    $region7: #{tpu_custom_call.1} parent=1 // pred_check_branch
      %27 = sbr.rel (0) target = $region9
    $region8: #{tpu_custom_call.1} parent=1 // pred_region
      %s29 = ssub.s32 18816, 18816
      %30 = vsyncadd [#allocation6], %s29
      %s31 = sshll.u32 [#allocation5], 4
      %s32 = int_to_ptr.vmem [resolvable:$true] %s31
      %37 = dma.hbm_to_vmem [thread:$0]  %s1, 18816, %s32, [#allocation6], 192, 192, 12
    $region9: #{tpu_custom_call.1} parent=1 // pred_fallthru
      _
    // Predicated region
    $region10: #{tpu_custom_call.1} parent=1 // pred_check
      _
    $region11: #{tpu_custom_call.1} parent=1 // pred_check_branch
      %39 = sbr.rel (0) target = $region13
    $region12: #{tpu_custom_call.1} parent=1 // pred_region
      %s41 = ssub.s32 3072, 3072
      %42 = vsyncadd [#allocation6], %s41
      %s43 = sshll.u32 [#allocation7], 4
      %s44 = int_to_ptr.vmem [resolvable:$true] %s43
      %49 = dma.hbm_to_vmem [thread:$0]  %s2, 3072, %s44, [#allocation6], 64, 64, 4
    $region13: #{tpu_custom_call.1} parent=1 // pred_fallthru
      _
    // Predicated region
    $region14: #{tpu_custom_call.1} parent=1 // pred_check
      _
    $region15: #{tpu_custom_call.1} parent=1 // pred_check_branch
      %51 = sbr.rel (0) target = $region17
    $region16: #{tpu_custom_call.1} parent=1 // pred_region
      %s53 = ssub.s32 1024, 1024
      %54 = vsyncadd [#allocation9], %s53
      %s55 = sshll.u32 [#allocation8], 4
      %s56 = int_to_ptr.vmem [resolvable:$true] %s55
      %61 = dma.hbm_to_vmem [thread:$0]  %s3, 1024, %s56, [#allocation9], 64, 64, 4
    $region17: #{tpu_custom_call.1} parent=1 // pred_fallthru
      _
    // Predicated region
    $region18: #{tpu_custom_call.1} parent=1 // pred_check
      _
    $region19: #{tpu_custom_call.1} parent=1 // pred_check_branch
      %63 = sbr.rel (0) target = $region21
    $region20: #{tpu_custom_call.1} parent=1 // pred_region
      _
    $region21: #{tpu_custom_call.1} parent=1 // pred_fallthru
      _
    // Predicated region
    $region22: #{tpu_custom_call.1} parent=1 // pred_check
      _
    $region23: #{tpu_custom_call.1} parent=1 // pred_check_branch
      %65 = sbr.rel (0) target = $region25
    $region24: #{tpu_custom_call.1} parent=1 // pred_region
      %66 = dma.done [#allocation3], 896
    $region25: #{tpu_custom_call.1} parent=1 // pred_fallthru
      _
    // Predicated region
    $region26: #{tpu_custom_call.1} parent=1 // pred_check
      _
    $region27: #{tpu_custom_call.1} parent=1 // pred_check_branch
      %68 = sbr.rel (0) target = $region29
    $region28: #{tpu_custom_call.1} parent=1 // pred_region
      %69 = dma.done [#allocation6], 18816
    $region29: #{tpu_custom_call.1} parent=1 // pred_fallthru
      _
    // Predicated region
    $region30: #{tpu_custom_call.1} parent=1 // pred_check
      _
    $region31: #{tpu_custom_call.1} parent=1 // pred_check_branch
      %71 = sbr.rel (0) target = $region33
    $region32: #{tpu_custom_call.1} parent=1 // pred_region
      %72 = dma.done [#allocation6], 3072
    $region33: #{tpu_custom_call.1} parent=1 // pred_fallthru
      _
    // Predicated region
    $region34: #{tpu_custom_call.1} parent=1 // pred_check
      _
    $region35: #{tpu_custom_call.1} parent=1 // pred_check_branch
      %74 = sbr.rel (0) target = $region37
    $region36: #{tpu_custom_call.1} parent=1 // pred_region
      %75 = dma.done [#allocation9], 1024
    $region37: #{tpu_custom_call.1} parent=1 // pred_fallthru
      _
    %v77 = vld [vmem:[#allocation2] sm:$0xff]
    %v78 = vld [vmem:[#allocation2 + $0x8] sm:$0xff]
    %v79 = vld [vmem:[#allocation2 + $0x10] sm:$0xff]
    %v80 = vld [vmem:[#allocation2 + $0x18] sm:$0xf]
    %v81 = vld [vmem:[#allocation2 + $0x1c] sm:$0xff]
    %v82 = vld [vmem:[#allocation2 + $0x24] sm:$0xff]
    %v83 = vld [vmem:[#allocation2 + $0x2c] sm:$0xff]
    %v84 = vld [vmem:[#allocation2 + $0x34] sm:$0xf]
    %v85 = vld [vmem:[%s4] sm:$0x7]
    %v86 = vld [vmem:[%s4 + $0x3] sm:$0x1]
    %v87 = vld [vmem:[%s4 + $0x4] sm:$0x1]
    %v88 = vld [vmem:[#allocation5] sm:$0xff]
    %v89 = vld [vmem:[#allocation5 + $0x8] sm:$0xf]
    %v90 = vld [vmem:[#allocation5 + $0xc] sm:$0xff]
    %v91 = vld [vmem:[#allocation5 + $0x14] sm:$0xf]
    %v92 = vld [vmem:[#allocation5 + $0x18] sm:$0xff]
    %v93 = vld [vmem:[#allocation5 + $0x20] sm:$0xf]
    %v94 = vld [vmem:[#allocation5 + $0x24] sm:$0xff]
    %v95 = vld [vmem:[#allocation5 + $0x2c] sm:$0xf]
    %v96 = vld [vmem:[#allocation5 + $0x30] sm:$0xff]
    %v97 = vld [vmem:[#allocation5 + $0x38] sm:$0xf]
    %v98 = vld [vmem:[#allocation5 + $0x3c] sm:$0xff]
    %v99 = vld [vmem:[#allocation5 + $0x44] sm:$0xf]
    %v100 = vld [vmem:[#allocation5 + $0x48] sm:$0xff]
    %v101 = vld [vmem:[#allocation5 + $0x50] sm:$0xf]
    %v102 = vld [vmem:[#allocation5 + $0x54] sm:$0xff]
    %v103 = vld [vmem:[#allocation5 + $0x5c] sm:$0xf]
    %v104 = vld [vmem:[#allocation5 + $0x60] sm:$0xff]
    %v105 = vld [vmem:[#allocation5 + $0x68] sm:$0xf]
    %v106 = vld [vmem:[#allocation5 + $0x6c] sm:$0xff]
    %v107 = vld [vmem:[#allocation5 + $0x74] sm:$0xf]
    %v108 = vld [vmem:[#allocation5 + $0x78] sm:$0xff]
    %v109 = vld [vmem:[#allocation5 + $0x80] sm:$0xf]
    %v110 = vld [vmem:[#allocation5 + $0x84] sm:$0xff]
    %v111 = vld [vmem:[#allocation5 + $0x8c] sm:$0xf]
    %v112 = vld [vmem:[#allocation5 + $0x90] sm:$0xff]
    %v113 = vld [vmem:[#allocation5 + $0x98] sm:$0xf]
    %v114 = vld [vmem:[#allocation5 + $0x9c] sm:$0xff]
    %v115 = vld [vmem:[#allocation5 + $0xa4] sm:$0xf]
    %v116 = vld [vmem:[#allocation5 + $0xa8] sm:$0xff]
    %v117 = vld [vmem:[#allocation5 + $0xb0] sm:$0xf]
    %v118 = vld [vmem:[#allocation5 + $0xb4] sm:$0xff]
    %v119 = vld [vmem:[#allocation5 + $0xbc] sm:$0xf]
    %v120 = vld [vmem:[#allocation5 + $0xc0] sm:$0xff]
    %v121 = vld [vmem:[#allocation5 + $0xc8] sm:$0xf]
    %v122 = vld [vmem:[#allocation5 + $0xcc] sm:$0xff]
    %v123 = vld [vmem:[#allocation5 + $0xd4] sm:$0xf]
    %v124 = vld [vmem:[#allocation5 + $0xd8] sm:$0xff]
    %v125 = vld [vmem:[#allocation5 + $0xe0] sm:$0xf]
    %v126 = vld [vmem:[#allocation5 + $0xe4] sm:$0xff]
    %v127 = vld [vmem:[#allocation5 + $0xec] sm:$0xf]
    %v128 = vld [vmem:[#allocation5 + $0xf0] sm:$0xff]
    %v129 = vld [vmem:[#allocation5 + $0xf8] sm:$0xf]
    %v130 = vld [vmem:[#allocation5 + $0xfc] sm:$0xff]
    %v131 = vld [vmem:[#allocation5 + $0x104] sm:$0xf]
    %v132 = vld [vmem:[#allocation5 + $0x108] sm:$0xff]
    %v133 = vld [vmem:[#allocation5 + $0x110] sm:$0xf]
    %v134 = vld [vmem:[#allocation5 + $0x114] sm:$0xff]
    %v135 = vld [vmem:[#allocation5 + $0x11c] sm:$0xf]
    %v136 = vld [vmem:[#allocation5 + $0x120] sm:$0xff]
    %v137 = vld [vmem:[#allocation5 + $0x128] sm:$0xf]
    %v138 = vld [vmem:[#allocation5 + $0x12c] sm:$0xff]
    %v139 = vld [vmem:[#allocation5 + $0x134] sm:$0xf]
    %v140 = vld [vmem:[#allocation5 + $0x138] sm:$0xff]
    %v141 = vld [vmem:[#allocation5 + $0x140] sm:$0xf]
    %v142 = vld [vmem:[#allocation5 + $0x144] sm:$0xff]
    %v143 = vld [vmem:[#allocation5 + $0x14c] sm:$0xf]
    %v144 = vld [vmem:[#allocation5 + $0x150] sm:$0xff]
    %v145 = vld [vmem:[#allocation5 + $0x158] sm:$0xf]
    %v146 = vld [vmem:[#allocation5 + $0x15c] sm:$0xff]
    %v147 = vld [vmem:[#allocation5 + $0x164] sm:$0xf]
    %v148 = vld [vmem:[#allocation5 + $0x168] sm:$0xff]
    %v149 = vld [vmem:[#allocation5 + $0x170] sm:$0xf]
    %v150 = vld [vmem:[#allocation5 + $0x174] sm:$0xff]
    %v151 = vld [vmem:[#allocation5 + $0x17c] sm:$0xf]
    %v152 = vld [vmem:[#allocation5 + $0x180] sm:$0xff]
    %v153 = vld [vmem:[#allocation5 + $0x188] sm:$0xf]
    %v154 = vld [vmem:[#allocation5 + $0x18c] sm:$0xff]
    %v155 = vld [vmem:[#allocation5 + $0x194] sm:$0xf]
    %v156 = vld [vmem:[#allocation5 + $0x198] sm:$0xff]
    %v157 = vld [vmem:[#allocation5 + $0x1a0] sm:$0xf]
    %v158 = vld [vmem:[#allocation5 + $0x1a4] sm:$0xff]
    %v159 = vld [vmem:[#allocation5 + $0x1ac] sm:$0xf]
    %v160 = vld [vmem:[#allocation5 + $0x1b0] sm:$0xff]
    %v161 = vld [vmem:[#allocation5 + $0x1b8] sm:$0xf]
    %v162 = vld [vmem:[#allocation5 + $0x1bc] sm:$0xff]
    %v163 = vld [vmem:[#allocation5 + $0x1c4] sm:$0xf]
    %v164 = vld [vmem:[#allocation5 + $0x1c8] sm:$0xff]
    %v165 = vld [vmem:[#allocation5 + $0x1d0] sm:$0xf]
    %v166 = vld [vmem:[#allocation5 + $0x1d4] sm:$0xff]
    %v167 = vld [vmem:[#allocation5 + $0x1dc] sm:$0xf]
    %v168 = vld [vmem:[#allocation5 + $0x1e0] sm:$0xff]
    %v169 = vld [vmem:[#allocation5 + $0x1e8] sm:$0xf]
    %v170 = vld [vmem:[#allocation5 + $0x1ec] sm:$0xff]
    %v171 = vld [vmem:[#allocation5 + $0x1f4] sm:$0xf]
    %v172 = vld [vmem:[#allocation5 + $0x1f8] sm:$0xff]
    %v173 = vld [vmem:[#allocation5 + $0x200] sm:$0xf]
    %v174 = vld [vmem:[#allocation5 + $0x204] sm:$0xff]
    %v175 = vld [vmem:[#allocation5 + $0x20c] sm:$0xf]
    %v176 = vld [vmem:[#allocation5 + $0x210] sm:$0xff]
    %v177 = vld [vmem:[#allocation5 + $0x218] sm:$0xf]
    %v178 = vld [vmem:[#allocation5 + $0x21c] sm:$0xff]
    %v179 = vld [vmem:[#allocation5 + $0x224] sm:$0xf]
    %v180 = vld [vmem:[#allocation5 + $0x228] sm:$0xff]
    %v181 = vld [vmem:[#allocation5 + $0x230] sm:$0xf]
    %v182 = vld [vmem:[#allocation5 + $0x234] sm:$0xff]
    %v183 = vld [vmem:[#allocation5 + $0x23c] sm:$0xf]
    %v184 = vld [vmem:[#allocation5 + $0x240] sm:$0xff]
    %v185 = vld [vmem:[#allocation5 + $0x248] sm:$0xf]
    %v186 = vld [vmem:[#allocation5 + $0x24c] sm:$0xff]
    %v187 = vld [vmem:[#allocation5 + $0x254] sm:$0xf]
    %v188 = vld [vmem:[#allocation5 + $0x258] sm:$0xff]
    %v189 = vld [vmem:[#allocation5 + $0x260] sm:$0xf]
    %v190 = vld [vmem:[#allocation5 + $0x264] sm:$0xff]
    %v191 = vld [vmem:[#allocation5 + $0x26c] sm:$0xf]
    %v192 = vld [vmem:[#allocation5 + $0x270] sm:$0xff]
    %v193 = vld [vmem:[#allocation5 + $0x278] sm:$0xf]
    %v194 = vld [vmem:[#allocation5 + $0x27c] sm:$0xff]
    %v195 = vld [vmem:[#allocation5 + $0x284] sm:$0xf]
    %v196 = vld [vmem:[#allocation5 + $0x288] sm:$0xff]
    %v197 = vld [vmem:[#allocation5 + $0x290] sm:$0xf]
    %v198 = vld [vmem:[#allocation5 + $0x294] sm:$0xff]
    %v199 = vld [vmem:[#allocation5 + $0x29c] sm:$0xf]
    %v200 = vld [vmem:[#allocation5 + $0x2a0] sm:$0xff]
    %v201 = vld [vmem:[#allocation5 + $0x2a8] sm:$0xf]
    %v202 = vld [vmem:[#allocation5 + $0x2ac] sm:$0xff]
    %v203 = vld [vmem:[#allocation5 + $0x2b4] sm:$0xf]
    %v204 = vld [vmem:[#allocation5 + $0x2b8] sm:$0xff]
    %v205 = vld [vmem:[#allocation5 + $0x2c0] sm:$0xf]
    %v206 = vld [vmem:[#allocation5 + $0x2c4] sm:$0xff]
    %v207 = vld [vmem:[#allocation5 + $0x2cc] sm:$0xf]
    %v208 = vld [vmem:[#allocation5 + $0x2d0] sm:$0xff]
    %v209 = vld [vmem:[#allocation5 + $0x2d8] sm:$0xf]
    %v210 = vld [vmem:[#allocation5 + $0x2dc] sm:$0xff]
    %v211 = vld [vmem:[#allocation5 + $0x2e4] sm:$0xf]
    %v212 = vld [vmem:[#allocation5 + $0x2e8] sm:$0xff]
    %v213 = vld [vmem:[#allocation5 + $0x2f0] sm:$0xf]
    %v214 = vld [vmem:[#allocation5 + $0x2f4] sm:$0xff]
    %v215 = vld [vmem:[#allocation5 + $0x2fc] sm:$0xf]
    %v216 = vld [vmem:[#allocation5 + $0x300] sm:$0xff]
    %v217 = vld [vmem:[#allocation5 + $0x308] sm:$0xf]
    %v218 = vld [vmem:[#allocation5 + $0x30c] sm:$0xff]
    %v219 = vld [vmem:[#allocation5 + $0x314] sm:$0xf]
    %v220 = vld [vmem:[#allocation5 + $0x318] sm:$0xff]
    %v221 = vld [vmem:[#allocation5 + $0x320] sm:$0xf]
    %v222 = vld [vmem:[#allocation5 + $0x324] sm:$0xff]
    %v223 = vld [vmem:[#allocation5 + $0x32c] sm:$0xf]
    %v224 = vld [vmem:[#allocation5 + $0x330] sm:$0xff]
    %v225 = vld [vmem:[#allocation5 + $0x338] sm:$0xf]
    %v226 = vld [vmem:[#allocation5 + $0x33c] sm:$0xff]
    %v227 = vld [vmem:[#allocation5 + $0x344] sm:$0xf]
    %v228 = vld [vmem:[#allocation5 + $0x348] sm:$0xff]
    %v229 = vld [vmem:[#allocation5 + $0x350] sm:$0xf]
    %v230 = vld [vmem:[#allocation5 + $0x354] sm:$0xff]
    %v231 = vld [vmem:[#allocation5 + $0x35c] sm:$0xf]
    %v232 = vld [vmem:[#allocation5 + $0x360] sm:$0xff]
    %v233 = vld [vmem:[#allocation5 + $0x368] sm:$0xf]
    %v234 = vld [vmem:[#allocation5 + $0x36c] sm:$0xff]
    %v235 = vld [vmem:[#allocation5 + $0x374] sm:$0xf]
    %v236 = vld [vmem:[#allocation5 + $0x378] sm:$0xff]
    %v237 = vld [vmem:[#allocation5 + $0x380] sm:$0xf]
    %v238 = vld [vmem:[#allocation5 + $0x384] sm:$0xff]
    %v239 = vld [vmem:[#allocation5 + $0x38c] sm:$0xf]
    %v240 = vld [vmem:[#allocation5 + $0x390] sm:$0xff]
    %v241 = vld [vmem:[#allocation5 + $0x398] sm:$0xf]
    %v242 = vld [vmem:[#allocation5 + $0x39c] sm:$0xff]
    %v243 = vld [vmem:[#allocation5 + $0x3a4] sm:$0xf]
    %v244 = vld [vmem:[#allocation5 + $0x3a8] sm:$0xff]
    %v245 = vld [vmem:[#allocation5 + $0x3b0] sm:$0xf]
    %v246 = vld [vmem:[#allocation5 + $0x3b4] sm:$0xff]
    %v247 = vld [vmem:[#allocation5 + $0x3bc] sm:$0xf]
    %v248 = vld [vmem:[#allocation5 + $0x3c0] sm:$0xff]
    %v249 = vld [vmem:[#allocation5 + $0x3c8] sm:$0xf]
    %v250 = vld [vmem:[#allocation5 + $0x3cc] sm:$0xff]
    %v251 = vld [vmem:[#allocation5 + $0x3d4] sm:$0xf]
    %v252 = vld [vmem:[#allocation5 + $0x3d8] sm:$0xff]
    %v253 = vld [vmem:[#allocation5 + $0x3e0] sm:$0xf]
    %v254 = vld [vmem:[#allocation5 + $0x3e4] sm:$0xff]
    %v255 = vld [vmem:[#allocation5 + $0x3ec] sm:$0xf]
    %v256 = vld [vmem:[#allocation5 + $0x3f0] sm:$0xff]
    %v257 = vld [vmem:[#allocation5 + $0x3f8] sm:$0xf]
    %v258 = vld [vmem:[#allocation5 + $0x3fc] sm:$0xff]
    %v259 = vld [vmem:[#allocation5 + $0x404] sm:$0xf]
    %v260 = vld [vmem:[#allocation5 + $0x408] sm:$0xff]
    %v261 = vld [vmem:[#allocation5 + $0x410] sm:$0xf]
    %v262 = vld [vmem:[#allocation5 + $0x414] sm:$0xff]
    %v263 = vld [vmem:[#allocation5 + $0x41c] sm:$0xf]
    %v264 = vld [vmem:[#allocation5 + $0x420] sm:$0xff]
    %v265 = vld [vmem:[#allocation5 + $0x428] sm:$0xf]
    %v266 = vld [vmem:[#allocation5 + $0x42c] sm:$0xff]
    %v267 = vld [vmem:[#allocation5 + $0x434] sm:$0xf]
    %v268 = vld [vmem:[#allocation5 + $0x438] sm:$0xff]
    %v269 = vld [vmem:[#allocation5 + $0x440] sm:$0xf]
    %v270 = vld [vmem:[#allocation5 + $0x444] sm:$0xff]
    %v271 = vld [vmem:[#allocation5 + $0x44c] sm:$0xf]
    %v272 = vld [vmem:[#allocation5 + $0x450] sm:$0xff]
    %v273 = vld [vmem:[#allocation5 + $0x458] sm:$0xf]
    %v274 = vld [vmem:[#allocation5 + $0x45c] sm:$0xff]
    %v275 = vld [vmem:[#allocation5 + $0x464] sm:$0xf]
    %v276 = vld [vmem:[#allocation5 + $0x468] sm:$0xff]
    %v277 = vld [vmem:[#allocation5 + $0x470] sm:$0xf]
    %v278 = vld [vmem:[#allocation5 + $0x474] sm:$0xff]
    %v279 = vld [vmem:[#allocation5 + $0x47c] sm:$0xf]
    %v280 = vld [vmem:[#allocation5 + $0x480] sm:$0xff]
    %v281 = vld [vmem:[#allocation5 + $0x488] sm:$0xf]
    %v282 = vld [vmem:[#allocation5 + $0x48c] sm:$0xff]
    %v283 = vld [vmem:[#allocation5 + $0x494] sm:$0xf]
    %v285 = vlaneseq
    %v286 = vshrl.u32 %v285, 7
    %v287 = vsub.s32 0, %v286
    %v288 = vrot.slane %v85, %v287
    %v289 = vlaneseq
    %v290 = vshrl.u32 %v289, 7
    %v291 = vsub.s32 1, %v290
    %v292 = vrot.slane %v85, %v291
    %v293 = vlaneseq
    %v294 = vshrl.u32 %v293, 7
    %v295 = vsub.s32 2, %v294
    %v296 = vrot.slane %v85, %v295
    %v308 = vunpack.c.l.b16 %v77
    %v309 = vunpack.c.h.b16 %v77
    %v310 = vunpack.c.l.b16 %v78
    %v311 = vunpack.c.h.b16 %v78
    %v312 = vunpack.c.l.b16 %v79
    %v313 = vunpack.c.h.b16 %v79
    %v314 = vunpack.c.l.b16 %v80
    %v315 = vunpack.c.l.b16 %v81
    %v316 = vunpack.c.h.b16 %v81
    %v317 = vunpack.c.l.b16 %v82
    %v318 = vunpack.c.h.b16 %v82
    %v319 = vunpack.c.l.b16 %v83
    %v320 = vunpack.c.h.b16 %v83
    %v321 = vunpack.c.l.b16 %v84
    %v322 = vpack.c.b16 %v315, %v308
    %v323 = vpack.c.b16 %v316, %v309
    %v324 = vpack.c.b16 %v317, %v310
    %v325 = vpack.c.b16 %v318, %v311
    %v326 = vpack.c.b16 %v319, %v312
    %v327 = vpack.c.b16 %v320, %v313
    %v328 = vpack.c.b16 %v321, %v314
    %v531 = vunpack.c.l.b16 %v88
    %v532 = vunpack.c.h.b16 %v88
    %v533 = vunpack.c.l.b16 %v89
    %v534 = vunpack.c.l.b16 %v90
    %v535 = vunpack.c.h.b16 %v90
    %v536 = vunpack.c.l.b16 %v91
    %v537 = vunpack.c.l.b16 %v92
    %v538 = vunpack.c.h.b16 %v92
    %v539 = vunpack.c.l.b16 %v93
    %v540 = vunpack.c.l.b16 %v94
    %v541 = vunpack.c.h.b16 %v94
    %v542 = vunpack.c.l.b16 %v95
    %v543 = vunpack.c.l.b16 %v96
    %v544 = vunpack.c.h.b16 %v96
    %v545 = vunpack.c.l.b16 %v97
    %v546 = vunpack.c.l.b16 %v98
    %v547 = vunpack.c.h.b16 %v98
    %v548 = vunpack.c.l.b16 %v99
    %v549 = vunpack.c.l.b16 %v100
    %v550 = vunpack.c.h.b16 %v100
    %v551 = vunpack.c.l.b16 %v101
    %v552 = vunpack.c.l.b16 %v102
    %v553 = vunpack.c.h.b16 %v102
    %v554 = vunpack.c.l.b16 %v103
    %v555 = vunpack.c.l.b16 %v104
    %v556 = vunpack.c.h.b16 %v104
    %v557 = vunpack.c.l.b16 %v105
    %v558 = vunpack.c.l.b16 %v106
    %v559 = vunpack.c.h.b16 %v106
    %v560 = vunpack.c.l.b16 %v107
    %v561 = vunpack.c.l.b16 %v108
    %v562 = vunpack.c.h.b16 %v108
    %v563 = vunpack.c.l.b16 %v109
    %v564 = vunpack.c.l.b16 %v110
    %v565 = vunpack.c.h.b16 %v110
    %v566 = vunpack.c.l.b16 %v111
    %v567 = vunpack.c.l.b16 %v112
    %v568 = vunpack.c.h.b16 %v112
    %v569 = vunpack.c.l.b16 %v113
    %v570 = vunpack.c.l.b16 %v114
    %v571 = vunpack.c.h.b16 %v114
    %v572 = vunpack.c.l.b16 %v115
    %v573 = vunpack.c.l.b16 %v116
    %v574 = vunpack.c.h.b16 %v116
    %v575 = vunpack.c.l.b16 %v117
    %v576 = vunpack.c.l.b16 %v118
    %v577 = vunpack.c.h.b16 %v118
    %v578 = vunpack.c.l.b16 %v119
    %v579 = vunpack.c.l.b16 %v120
    %v580 = vunpack.c.h.b16 %v120
    %v581 = vunpack.c.l.b16 %v121
    %v582 = vunpack.c.l.b16 %v122
    %v583 = vunpack.c.h.b16 %v122
    %v584 = vunpack.c.l.b16 %v123
    %v585 = vunpack.c.l.b16 %v124
    %v586 = vunpack.c.h.b16 %v124
    %v587 = vunpack.c.l.b16 %v125
    %v588 = vunpack.c.l.b16 %v126
    %v589 = vunpack.c.h.b16 %v126
    %v590 = vunpack.c.l.b16 %v127
    %v591 = vunpack.c.l.b16 %v128
    %v592 = vunpack.c.h.b16 %v128
    %v593 = vunpack.c.l.b16 %v129
    %v594 = vunpack.c.l.b16 %v130
    %v595 = vunpack.c.h.b16 %v130
    %v596 = vunpack.c.l.b16 %v131
    %v597 = vunpack.c.l.b16 %v132
    %v598 = vunpack.c.h.b16 %v132
    %v599 = vunpack.c.l.b16 %v133
    %v600 = vunpack.c.l.b16 %v134
    %v601 = vunpack.c.h.b16 %v134
    %v602 = vunpack.c.l.b16 %v135
    %v603 = vunpack.c.l.b16 %v136
    %v604 = vunpack.c.h.b16 %v136
    %v605 = vunpack.c.l.b16 %v137
    %v606 = vunpack.c.l.b16 %v138
    %v607 = vunpack.c.h.b16 %v138
    %v608 = vunpack.c.l.b16 %v139
    %v609 = vunpack.c.l.b16 %v140
    %v610 = vunpack.c.h.b16 %v140
    %v611 = vunpack.c.l.b16 %v141
    %v612 = vunpack.c.l.b16 %v142
    %v613 = vunpack.c.h.b16 %v142
    %v614 = vunpack.c.l.b16 %v143
    %v615 = vunpack.c.l.b16 %v144
    %v616 = vunpack.c.h.b16 %v144
    %v617 = vunpack.c.l.b16 %v145
    %v618 = vunpack.c.l.b16 %v146
    %v619 = vunpack.c.h.b16 %v146
    %v620 = vunpack.c.l.b16 %v147
    %v621 = vunpack.c.l.b16 %v148
    %v622 = vunpack.c.h.b16 %v148
    %v623 = vunpack.c.l.b16 %v149
    %v624 = vunpack.c.l.b16 %v150
    %v625 = vunpack.c.h.b16 %v150
    %v626 = vunpack.c.l.b16 %v151
    %v627 = vunpack.c.l.b16 %v152
    %v628 = vunpack.c.h.b16 %v152
    %v629 = vunpack.c.l.b16 %v153
    %v630 = vunpack.c.l.b16 %v154
    %v631 = vunpack.c.h.b16 %v154
    %v632 = vunpack.c.l.b16 %v155
    %v633 = vunpack.c.l.b16 %v156
    %v634 = vunpack.c.h.b16 %v156
    %v635 = vunpack.c.l.b16 %v157
    %v636 = vunpack.c.l.b16 %v158
    %v637 = vunpack.c.h.b16 %v158
    %v638 = vunpack.c.l.b16 %v159
    %v639 = vunpack.c.l.b16 %v160
    %v640 = vunpack.c.h.b16 %v160
    %v641 = vunpack.c.l.b16 %v161
    %v642 = vunpack.c.l.b16 %v162
    %v643 = vunpack.c.h.b16 %v162
    %v644 = vunpack.c.l.b16 %v163
    %v645 = vunpack.c.l.b16 %v164
    %v646 = vunpack.c.h.b16 %v164
    %v647 = vunpack.c.l.b16 %v165
    %v648 = vunpack.c.l.b16 %v166
    %v649 = vunpack.c.h.b16 %v166
    %v650 = vunpack.c.l.b16 %v167
    %v651 = vunpack.c.l.b16 %v168
    %v652 = vunpack.c.h.b16 %v168
    %v653 = vunpack.c.l.b16 %v169
    %v654 = vunpack.c.l.b16 %v170
    %v655 = vunpack.c.h.b16 %v170
    %v656 = vunpack.c.l.b16 %v171
    %v657 = vunpack.c.l.b16 %v172
    %v658 = vunpack.c.h.b16 %v172
    %v659 = vunpack.c.l.b16 %v173
    %v660 = vunpack.c.l.b16 %v174
    %v661 = vunpack.c.h.b16 %v174
    %v662 = vunpack.c.l.b16 %v175
    %v663 = vunpack.c.l.b16 %v176
    %v664 = vunpack.c.h.b16 %v176
    %v665 = vunpack.c.l.b16 %v177
    %v666 = vunpack.c.l.b16 %v178
    %v667 = vunpack.c.h.b16 %v178
    %v668 = vunpack.c.l.b16 %v179
    %v669 = vunpack.c.l.b16 %v180
    %v670 = vunpack.c.h.b16 %v180
    %v671 = vunpack.c.l.b16 %v181
    %v672 = vunpack.c.l.b16 %v182
    %v673 = vunpack.c.h.b16 %v182
    %v674 = vunpack.c.l.b16 %v183
    %v675 = vunpack.c.l.b16 %v184
    %v676 = vunpack.c.h.b16 %v184
    %v677 = vunpack.c.l.b16 %v185
    %v678 = vunpack.c.l.b16 %v186
    %v679 = vunpack.c.h.b16 %v186
    %v680 = vunpack.c.l.b16 %v187
    %v681 = vunpack.c.l.b16 %v188
    %v682 = vunpack.c.h.b16 %v188
    %v683 = vunpack.c.l.b16 %v189
    %v684 = vunpack.c.l.b16 %v190
    %v685 = vunpack.c.h.b16 %v190
    %v686 = vunpack.c.l.b16 %v191
    %v687 = vunpack.c.l.b16 %v192
    %v688 = vunpack.c.h.b16 %v192
    %v689 = vunpack.c.l.b16 %v193
    %v690 = vunpack.c.l.b16 %v194
    %v691 = vunpack.c.h.b16 %v194
    %v692 = vunpack.c.l.b16 %v195
    %v693 = vunpack.c.l.b16 %v196
    %v694 = vunpack.c.h.b16 %v196
    %v695 = vunpack.c.l.b16 %v197
    %v696 = vunpack.c.l.b16 %v198
    %v697 = vunpack.c.h.b16 %v198
    %v698 = vunpack.c.l.b16 %v199
    %v699 = vunpack.c.l.b16 %v200
    %v700 = vunpack.c.h.b16 %v200
    %v701 = vunpack.c.l.b16 %v201
    %v702 = vunpack.c.l.b16 %v202
    %v703 = vunpack.c.h.b16 %v202
    %v704 = vunpack.c.l.b16 %v203
    %v705 = vunpack.c.l.b16 %v204
    %v706 = vunpack.c.h.b16 %v204
    %v707 = vunpack.c.l.b16 %v205
    %v708 = vunpack.c.l.b16 %v206
    %v709 = vunpack.c.h.b16 %v206
    %v710 = vunpack.c.l.b16 %v207
    %v711 = vunpack.c.l.b16 %v208
    %v712 = vunpack.c.h.b16 %v208
    %v713 = vunpack.c.l.b16 %v209
    %v714 = vunpack.c.l.b16 %v210
    %v715 = vunpack.c.h.b16 %v210
    %v716 = vunpack.c.l.b16 %v211
    %v717 = vunpack.c.l.b16 %v212
    %v718 = vunpack.c.h.b16 %v212
    %v719 = vunpack.c.l.b16 %v213
    %v720 = vunpack.c.l.b16 %v214
    %v721 = vunpack.c.h.b16 %v214
    %v722 = vunpack.c.l.b16 %v215
    %v723 = vunpack.c.l.b16 %v216
    %v724 = vunpack.c.h.b16 %v216
    %v725 = vunpack.c.l.b16 %v217
    %v726 = vunpack.c.l.b16 %v218
    %v727 = vunpack.c.h.b16 %v218
    %v728 = vunpack.c.l.b16 %v219
    %v729 = vunpack.c.l.b16 %v220
    %v730 = vunpack.c.h.b16 %v220
    %v731 = vunpack.c.l.b16 %v221
    %v732 = vunpack.c.l.b16 %v222
    %v733 = vunpack.c.h.b16 %v222
    %v734 = vunpack.c.l.b16 %v223
    %v735 = vunpack.c.l.b16 %v224
    %v736 = vunpack.c.h.b16 %v224
    %v737 = vunpack.c.l.b16 %v225
    %v738 = vunpack.c.l.b16 %v226
    %v739 = vunpack.c.h.b16 %v226
    %v740 = vunpack.c.l.b16 %v227
    %v741 = vunpack.c.l.b16 %v228
    %v742 = vunpack.c.h.b16 %v228
    %v743 = vunpack.c.l.b16 %v229
    %v744 = vunpack.c.l.b16 %v230
    %v745 = vunpack.c.h.b16 %v230
    %v746 = vunpack.c.l.b16 %v231
    %v747 = vunpack.c.l.b16 %v232
    %v748 = vunpack.c.h.b16 %v232
    %v749 = vunpack.c.l.b16 %v233
    %v750 = vunpack.c.l.b16 %v234
    %v751 = vunpack.c.h.b16 %v234
    %v752 = vunpack.c.l.b16 %v235
    %v753 = vunpack.c.l.b16 %v236
    %v754 = vunpack.c.h.b16 %v236
    %v755 = vunpack.c.l.b16 %v237
    %v756 = vunpack.c.l.b16 %v238
    %v757 = vunpack.c.h.b16 %v238
    %v758 = vunpack.c.l.b16 %v239
    %v759 = vunpack.c.l.b16 %v240
    %v760 = vunpack.c.h.b16 %v240
    %v761 = vunpack.c.l.b16 %v241
    %v762 = vunpack.c.l.b16 %v242
    %v763 = vunpack.c.h.b16 %v242
    %v764 = vunpack.c.l.b16 %v243
    %v765 = vunpack.c.l.b16 %v244
    %v766 = vunpack.c.h.b16 %v244
    %v767 = vunpack.c.l.b16 %v245
    %v768 = vunpack.c.l.b16 %v246
    %v769 = vunpack.c.h.b16 %v246
    %v770 = vunpack.c.l.b16 %v247
    %v771 = vunpack.c.l.b16 %v248
    %v772 = vunpack.c.h.b16 %v248
    %v773 = vunpack.c.l.b16 %v249
    %v774 = vunpack.c.l.b16 %v250
    %v775 = vunpack.c.h.b16 %v250
    %v776 = vunpack.c.l.b16 %v251
    %v777 = vunpack.c.l.b16 %v252
    %v778 = vunpack.c.h.b16 %v252
    %v779 = vunpack.c.l.b16 %v253
    %v780 = vunpack.c.l.b16 %v254
    %v781 = vunpack.c.h.b16 %v254
    %v782 = vunpack.c.l.b16 %v255
    %v783 = vunpack.c.l.b16 %v256
    %v784 = vunpack.c.h.b16 %v256
    %v785 = vunpack.c.l.b16 %v257
    %v786 = vunpack.c.l.b16 %v258
    %v787 = vunpack.c.h.b16 %v258
    %v788 = vunpack.c.l.b16 %v259
    %v789 = vunpack.c.l.b16 %v260
    %v790 = vunpack.c.h.b16 %v260
    %v791 = vunpack.c.l.b16 %v261
    %v792 = vunpack.c.l.b16 %v262
    %v793 = vunpack.c.h.b16 %v262
    %v794 = vunpack.c.l.b16 %v263
    %v795 = vunpack.c.l.b16 %v264
    %v796 = vunpack.c.h.b16 %v264
    %v797 = vunpack.c.l.b16 %v265
    %v798 = vunpack.c.l.b16 %v266
    %v799 = vunpack.c.h.b16 %v266
    %v800 = vunpack.c.l.b16 %v267
    %v801 = vunpack.c.l.b16 %v268
    %v802 = vunpack.c.h.b16 %v268
    %v803 = vunpack.c.l.b16 %v269
    %v804 = vunpack.c.l.b16 %v270
    %v805 = vunpack.c.h.b16 %v270
    %v806 = vunpack.c.l.b16 %v271
    %v807 = vunpack.c.l.b16 %v272
    %v808 = vunpack.c.h.b16 %v272
    %v809 = vunpack.c.l.b16 %v273
    %v810 = vunpack.c.l.b16 %v274
    %v811 = vunpack.c.h.b16 %v274
    %v812 = vunpack.c.l.b16 %v275
    %v813 = vunpack.c.l.b16 %v276
    %v814 = vunpack.c.h.b16 %v276
    %v815 = vunpack.c.l.b16 %v277
    %v816 = vunpack.c.l.b16 %v278
    %v817 = vunpack.c.h.b16 %v278
    %v818 = vunpack.c.l.b16 %v279
    %v819 = vunpack.c.l.b16 %v280
    %v820 = vunpack.c.h.b16 %v280
    %v821 = vunpack.c.l.b16 %v281
    %v822 = vunpack.c.l.b16 %v282
    %v823 = vunpack.c.h.b16 %v282
    %v824 = vunpack.c.l.b16 %v283
    %v825 = vpack.c.b16 %v534, %v531
    %v826 = vpack.c.b16 %v535, %v532
    %v827 = vpack.c.b16 %v536, %v533
    %v828 = vpack.c.b16 %v540, %v537
    %v829 = vpack.c.b16 %v541, %v538
    %v830 = vpack.c.b16 %v542, %v539
    %v831 = vpack.c.b16 %v546, %v543
    %v832 = vpack.c.b16 %v547, %v544
    %v833 = vpack.c.b16 %v548, %v545
    %v834 = vpack.c.b16 %v552, %v549
    %v835 = vpack.c.b16 %v553, %v550
    %v836 = vpack.c.b16 %v554, %v551
    %v837 = vpack.c.b16 %v558, %v555
    %v838 = vpack.c.b16 %v559, %v556
    %v839 = vpack.c.b16 %v560, %v557
    %v840 = vpack.c.b16 %v564, %v561
    %v841 = vpack.c.b16 %v565, %v562
    %v842 = vpack.c.b16 %v566, %v563
    %v843 = vpack.c.b16 %v570, %v567
    %v844 = vpack.c.b16 %v571, %v568
    %v845 = vpack.c.b16 %v572, %v569
    %v846 = vpack.c.b16 %v576, %v573
    %v847 = vpack.c.b16 %v577, %v574
    %v848 = vpack.c.b16 %v578, %v575
    %v849 = vpack.c.b16 %v582, %v579
    %v850 = vpack.c.b16 %v583, %v580
    %v851 = vpack.c.b16 %v584, %v581
    %v852 = vpack.c.b16 %v588, %v585
    %v853 = vpack.c.b16 %v589, %v586
    %v854 = vpack.c.b16 %v590, %v587
    %v855 = vpack.c.b16 %v594, %v591
    %v856 = vpack.c.b16 %v595, %v592
    %v857 = vpack.c.b16 %v596, %v593
    %v858 = vpack.c.b16 %v600, %v597
    %v859 = vpack.c.b16 %v601, %v598
    %v860 = vpack.c.b16 %v602, %v599
    %v861 = vpack.c.b16 %v606, %v603
    %v862 = vpack.c.b16 %v607, %v604
    %v863 = vpack.c.b16 %v608, %v605
    %v864 = vpack.c.b16 %v612, %v609
    %v865 = vpack.c.b16 %v613, %v610
    %v866 = vpack.c.b16 %v614, %v611
    %v867 = vpack.c.b16 %v618, %v615
    %v868 = vpack.c.b16 %v619, %v616
    %v869 = vpack.c.b16 %v620, %v617
    %v870 = vpack.c.b16 %v624, %v621
    %v871 = vpack.c.b16 %v625, %v622
    %v872 = vpack.c.b16 %v626, %v623
    %v873 = vpack.c.b16 %v630, %v627
    %v874 = vpack.c.b16 %v631, %v628
    %v875 = vpack.c.b16 %v632, %v629
    %v876 = vpack.c.b16 %v636, %v633
    %v877 = vpack.c.b16 %v637, %v634
    %v878 = vpack.c.b16 %v638, %v635
    %v879 = vpack.c.b16 %v642, %v639
    %v880 = vpack.c.b16 %v643, %v640
    %v881 = vpack.c.b16 %v644, %v641
    %v882 = vpack.c.b16 %v648, %v645
    %v883 = vpack.c.b16 %v649, %v646
    %v884 = vpack.c.b16 %v650, %v647
    %v885 = vpack.c.b16 %v654, %v651
    %v886 = vpack.c.b16 %v655, %v652
    %v887 = vpack.c.b16 %v656, %v653
    %v888 = vpack.c.b16 %v660, %v657
    %v889 = vpack.c.b16 %v661, %v658
    %v890 = vpack.c.b16 %v662, %v659
    %v891 = vpack.c.b16 %v666, %v663
    %v892 = vpack.c.b16 %v667, %v664
    %v893 = vpack.c.b16 %v668, %v665
    %v894 = vpack.c.b16 %v672, %v669
    %v895 = vpack.c.b16 %v673, %v670
    %v896 = vpack.c.b16 %v674, %v671
    %v897 = vpack.c.b16 %v678, %v675
    %v898 = vpack.c.b16 %v679, %v676
    %v899 = vpack.c.b16 %v680, %v677
    %v900 = vpack.c.b16 %v684, %v681
    %v901 = vpack.c.b16 %v685, %v682
    %v902 = vpack.c.b16 %v686, %v683
    %v903 = vpack.c.b16 %v690, %v687
    %v904 = vpack.c.b16 %v691, %v688
    %v905 = vpack.c.b16 %v692, %v689
    %v906 = vpack.c.b16 %v696, %v693
    %v907 = vpack.c.b16 %v697, %v694
    %v908 = vpack.c.b16 %v698, %v695
    %v909 = vpack.c.b16 %v702, %v699
    %v910 = vpack.c.b16 %v703, %v700
    %v911 = vpack.c.b16 %v704, %v701
    %v912 = vpack.c.b16 %v708, %v705
    %v913 = vpack.c.b16 %v709, %v706
    %v914 = vpack.c.b16 %v710, %v707
    %v915 = vpack.c.b16 %v714, %v711
    %v916 = vpack.c.b16 %v715, %v712
    %v917 = vpack.c.b16 %v716, %v713
    %v918 = vpack.c.b16 %v720, %v717
    %v919 = vpack.c.b16 %v721, %v718
    %v920 = vpack.c.b16 %v722, %v719
    %v921 = vpack.c.b16 %v726, %v723
    %v922 = vpack.c.b16 %v727, %v724
    %v923 = vpack.c.b16 %v728, %v725
    %v924 = vpack.c.b16 %v732, %v729
    %v925 = vpack.c.b16 %v733, %v730
    %v926 = vpack.c.b16 %v734, %v731
    %v927 = vpack.c.b16 %v738, %v735
    %v928 = vpack.c.b16 %v739, %v736
    %v929 = vpack.c.b16 %v740, %v737
    %v930 = vpack.c.b16 %v744, %v741
    %v931 = vpack.c.b16 %v745, %v742
    %v932 = vpack.c.b16 %v746, %v743
    %v933 = vpack.c.b16 %v750, %v747
    %v934 = vpack.c.b16 %v751, %v748
    %v935 = vpack.c.b16 %v752, %v749
    %v936 = vpack.c.b16 %v756, %v753
    %v937 = vpack.c.b16 %v757, %v754
    %v938 = vpack.c.b16 %v758, %v755
    %v939 = vpack.c.b16 %v762, %v759
    %v940 = vpack.c.b16 %v763, %v760
    %v941 = vpack.c.b16 %v764, %v761
    %v942 = vpack.c.b16 %v768, %v765
    %v943 = vpack.c.b16 %v769, %v766
    %v944 = vpack.c.b16 %v770, %v767
    %v945 = vpack.c.b16 %v774, %v771
    %v946 = vpack.c.b16 %v775, %v772
    %v947 = vpack.c.b16 %v776, %v773
    %v948 = vpack.c.b16 %v780, %v777
    %v949 = vpack.c.b16 %v781, %v778
    %v950 = vpack.c.b16 %v782, %v779
    %v951 = vpack.c.b16 %v786, %v783
    %v952 = vpack.c.b16 %v787, %v784
    %v953 = vpack.c.b16 %v788, %v785
    %v954 = vpack.c.b16 %v792, %v789
    %v955 = vpack.c.b16 %v793, %v790
    %v956 = vpack.c.b16 %v794, %v791
    %v957 = vpack.c.b16 %v798, %v795
    %v958 = vpack.c.b16 %v799, %v796
    %v959 = vpack.c.b16 %v800, %v797
    %v960 = vpack.c.b16 %v804, %v801
    %v961 = vpack.c.b16 %v805, %v802
    %v962 = vpack.c.b16 %v806, %v803
    %v963 = vpack.c.b16 %v810, %v807
    %v964 = vpack.c.b16 %v811, %v808
    %v965 = vpack.c.b16 %v812, %v809
    %v966 = vpack.c.b16 %v816, %v813
    %v967 = vpack.c.b16 %v817, %v814
    %v968 = vpack.c.b16 %v818, %v815
    %v969 = vpack.c.b16 %v822, %v819
    %v970 = vpack.c.b16 %v823, %v820
    %v971 = vpack.c.b16 %v824, %v821
    %vm1119 = vcmask 130048
    %v1121 = vsel %vm1119, %v328, 0
    %1123 = vmatprep.subr.bf16.mxu0 %v847
    %1124 = vmatpush1.bf16.msra.mxu0 %v846
    %1125 = vmatprep.subr.bf16.mxu0 %v844
    %1126 = vmatpush1.bf16.msra.mxu0 %v843
    %1127 = vmatprep.subr.bf16.mxu0 %v841
    %1128 = vmatpush1.bf16.msra.mxu0 %v840
    %1129 = vmatprep.subr.bf16.mxu0 %v838
    %1130 = vmatpush1.bf16.msra.mxu0 %v837
    %1131 = vmatprep.subr.bf16.mxu0 %v835
    %1132 = vmatpush1.bf16.msra.mxu0 %v834
    %1133 = vmatprep.subr.bf16.mxu0 %v832
    %1134 = vmatpush1.bf16.msra.mxu0 %v831
    %1135 = vmatprep.subr.bf16.mxu0 %v829
    %1136 = vmatpush1.bf16.msra.mxu0 %v828
    %1137 = vmatprep.subr.bf16.mxu0 %v826
    %1138 = vmatpush1.bf16.msra.mxu0 %v825
    %1139 = vmatprep.subr.bf16.mxu0 %v871
    %1140 = vmatpush2.bf16.msra.mxu0 %v870
    %1141 = vmatprep.subr.bf16.mxu0 %v868
    %1142 = vmatpush2.bf16.msra.mxu0 %v867
    %1143 = vmatprep.subr.bf16.mxu0 %v865
    %1144 = vmatpush2.bf16.msra.mxu0 %v864
    %1145 = vmatprep.subr.bf16.mxu0 %v862
    %1146 = vmatpush2.bf16.msra.mxu0 %v861
    %1147 = vmatprep.subr.bf16.mxu0 %v859
    %1148 = vmatpush2.bf16.msra.mxu0 %v858
    %1149 = vmatprep.subr.bf16.mxu0 %v856
    %1150 = vmatpush2.bf16.msra.mxu0 %v855
    %1151 = vmatprep.subr.bf16.mxu0 %v853
    %1152 = vmatpush2.bf16.msra.mxu0 %v852
    %1153 = vmatprep.subr.bf16.mxu0 %v850
    %1154 = vmatpush2.bf16.msra.mxu0 %v849
    %1155 = vmatprep.mubr.bf16.mxu0 %v323
    %1156 = vmatmul.mubr.bf16.gmra.mxu0 %v322
    %v1157 = vpop.f32.mrf.mxu0
    %v1158 = vadd.f32 %v288, %v1157
    %v1159 = vpop.f32.mrf.mxu0
    %v1160 = vadd.f32 %v292, %v1159
    %v1161 = vpop.f32.mrf.mxu0
    %v1162 = vadd.f32 %v288, %v1161
    %v1163 = vpop.f32.mrf.mxu0
    %v1164 = vadd.f32 %v292, %v1163
    %1165 = vdwg.mxu0
    %1166 = vmatprep.subr.bf16.mxu0 %v895
    %1167 = vmatpush1.bf16.msra.mxu0 %v894
    %1168 = vmatprep.subr.bf16.mxu0 %v892
    %1169 = vmatpush1.bf16.msra.mxu0 %v891
    %1170 = vmatprep.subr.bf16.mxu0 %v889
    %1171 = vmatpush1.bf16.msra.mxu0 %v888
    %1172 = vmatprep.subr.bf16.mxu0 %v886
    %1173 = vmatpush1.bf16.msra.mxu0 %v885
    %1174 = vmatprep.subr.bf16.mxu0 %v883
    %1175 = vmatpush1.bf16.msra.mxu0 %v882
    %1176 = vmatprep.subr.bf16.mxu0 %v880
    %1177 = vmatpush1.bf16.msra.mxu0 %v879
    %1178 = vmatprep.subr.bf16.mxu0 %v877
    %1179 = vmatpush1.bf16.msra.mxu0 %v876
    %1180 = vmatprep.subr.bf16.mxu0 %v874
    %1181 = vmatpush1.bf16.msra.mxu0 %v873
    %1182 = vmatprep.subr.bf16.mxu0 %v919
    %1183 = vmatpush2.bf16.msra.mxu0 %v918
    %1184 = vmatprep.subr.bf16.mxu0 %v916
    %1185 = vmatpush2.bf16.msra.mxu0 %v915
    %1186 = vmatprep.subr.bf16.mxu0 %v913
    %1187 = vmatpush2.bf16.msra.mxu0 %v912
    %1188 = vmatprep.subr.bf16.mxu0 %v910
    %1189 = vmatpush2.bf16.msra.mxu0 %v909
    %1190 = vmatprep.subr.bf16.mxu0 %v907
    %1191 = vmatpush2.bf16.msra.mxu0 %v906
    %1192 = vmatprep.subr.bf16.mxu0 %v904
    %1193 = vmatpush2.bf16.msra.mxu0 %v903
    %1194 = vmatprep.subr.bf16.mxu0 %v901
    %1195 = vmatpush2.bf16.msra.mxu0 %v900
    %1196 = vmatprep.subr.bf16.mxu0 %v898
    %1197 = vmatpush2.bf16.msra.mxu0 %v897
    %1198 = vmatprep.mubr.bf16.mxu0 %v325
    %1199 = vmatmul.mubr.bf16.gmra.mxu0 %v324
    %v1200 = vpop.f32.mrf.mxu0
    %v1201 = vadd.f32 %v1158, %v1200
    %v1202 = vpop.f32.mrf.mxu0
    %v1203 = vadd.f32 %v1160, %v1202
    %v1204 = vpop.f32.mrf.mxu0
    %v1205 = vadd.f32 %v1162, %v1204
    %v1206 = vpop.f32.mrf.mxu0
    %v1207 = vadd.f32 %v1164, %v1206
    %1208 = vdwg.mxu0
    %1209 = vmatprep.subr.bf16.mxu0 %v943
    %1210 = vmatpush1.bf16.msra.mxu0 %v942
    %1211 = vmatprep.subr.bf16.mxu0 %v940
    %1212 = vmatpush1.bf16.msra.mxu0 %v939
    %1213 = vmatprep.subr.bf16.mxu0 %v937
    %1214 = vmatpush1.bf16.msra.mxu0 %v936
    %1215 = vmatprep.subr.bf16.mxu0 %v934
    %1216 = vmatpush1.bf16.msra.mxu0 %v933
    %1217 = vmatprep.subr.bf16.mxu0 %v931
    %1218 = vmatpush1.bf16.msra.mxu0 %v930
    %1219 = vmatprep.subr.bf16.mxu0 %v928
    %1220 = vmatpush1.bf16.msra.mxu0 %v927
    %1221 = vmatprep.subr.bf16.mxu0 %v925
    %1222 = vmatpush1.bf16.msra.mxu0 %v924
    %1223 = vmatprep.subr.bf16.mxu0 %v922
    %1224 = vmatpush1.bf16.msra.mxu0 %v921
    %1225 = vmatprep.subr.bf16.mxu0 %v967
    %1226 = vmatpush2.bf16.msra.mxu0 %v966
    %1227 = vmatprep.subr.bf16.mxu0 %v964
    %1228 = vmatpush2.bf16.msra.mxu0 %v963
    %1229 = vmatprep.subr.bf16.mxu0 %v961
    %1230 = vmatpush2.bf16.msra.mxu0 %v960
    %1231 = vmatprep.subr.bf16.mxu0 %v958
    %1232 = vmatpush2.bf16.msra.mxu0 %v957
    %1233 = vmatprep.subr.bf16.mxu0 %v955
    %1234 = vmatpush2.bf16.msra.mxu0 %v954
    %1235 = vmatprep.subr.bf16.mxu0 %v952
    %1236 = vmatpush2.bf16.msra.mxu0 %v951
    %1237 = vmatprep.subr.bf16.mxu0 %v949
    %1238 = vmatpush2.bf16.msra.mxu0 %v948
    %1239 = vmatprep.subr.bf16.mxu0 %v946
    %1240 = vmatpush2.bf16.msra.mxu0 %v945
    %1241 = vmatprep.mubr.bf16.mxu0 %v327
    %1242 = vmatmul.mubr.bf16.gmra.mxu0 %v326
    %v1243 = vpop.f32.mrf.mxu0
    %v1244 = vadd.f32 %v1201, %v1243
    %v1245 = vpop.f32.mrf.mxu0
    %v1246 = vadd.f32 %v1203, %v1245
    %v1247 = vpop.f32.mrf.mxu0
    %v1248 = vadd.f32 %v1205, %v1247
    %v1249 = vpop.f32.mrf.mxu0
    %v1250 = vadd.f32 %v1207, %v1249
    %1251 = vdwg.mxu0
    %1252 = vmatprep.subr.bf16.mxu0 0
    %1253 = vmatpush1.bf16.msra.mxu0 0
    %1254 = vmatprep.subr.bf16.mxu0 0
    %1255 = vmatpush1.bf16.msra.mxu0 0
    %1256 = vmatprep.subr.bf16.mxu0 0
    %1257 = vmatpush1.bf16.msra.mxu0 0
    %1258 = vmatprep.subr.bf16.mxu0 0
    %1259 = vmatpush1.bf16.msra.mxu0 0
    %1260 = vmatprep.subr.bf16.mxu0 0
    %1261 = vmatpush1.bf16.msra.mxu0 0
    %1262 = vmatprep.subr.bf16.mxu0 0
    %1263 = vmatpush1.bf16.msra.mxu0 0
    %1264 = vmatprep.subr.bf16.mxu0 0
    %1265 = vmatpush1.bf16.msra.mxu0 0
    %1266 = vmatprep.subr.bf16.mxu0 %v970
    %1267 = vmatpush1.bf16.msra.mxu0 %v969
    %1268 = vmatprep.subr.bf16.mxu0 0
    %1269 = vmatpush2.bf16.msra.mxu0 0
    %1270 = vmatprep.subr.bf16.mxu0 0
    %1271 = vmatpush2.bf16.msra.mxu0 0
    %1272 = vmatprep.subr.bf16.mxu0 0
    %1273 = vmatpush2.bf16.msra.mxu0 0
    %1274 = vmatprep.subr.bf16.mxu0 0
    %1275 = vmatpush2.bf16.msra.mxu0 0
    %1276 = vmatprep.subr.bf16.mxu0 0
    %1277 = vmatpush2.bf16.msra.mxu0 0
    %1278 = vmatprep.subr.bf16.mxu0 0
    %1279 = vmatpush2.bf16.msra.mxu0 0
    %1280 = vmatprep.subr.bf16.mxu0 0
    %1281 = vmatpush2.bf16.msra.mxu0 0
    %1282 = vmatprep.subr.bf16.mxu0 0
    %1283 = vmatpush2.bf16.msra.mxu0 0
    %1284 = vmatprep.mubr.bf16.mxu0 0
    %1285 = vmatmul.mubr.bf16.gmra.mxu0 %v1121
    %v1286 = vpop.f32.mrf.mxu0
    %v1287 = vadd.f32 %v1244, %v1286
    %v1288 = vpop.f32.mrf.mxu0
    %v1289 = vadd.f32 %v1246, %v1288
    %v1290 = vpop.f32.mrf.mxu0
    %v1291 = vadd.f32 %v1248, %v1290
    %v1292 = vpop.f32.mrf.mxu0
    %v1293 = vadd.f32 %v1250, %v1292
    %1294 = vdwg.mxu0
    %1295 = vmatprep.subr.bf16.mxu0 0
    %1296 = vmatpush1.bf16.msra.mxu0 %v848
    %1297 = vmatprep.subr.bf16.mxu0 0
    %1298 = vmatpush1.bf16.msra.mxu0 %v845
    %1299 = vmatprep.subr.bf16.mxu0 0
    %1300 = vmatpush1.bf16.msra.mxu0 %v842
    %1301 = vmatprep.subr.bf16.mxu0 0
    %1302 = vmatpush1.bf16.msra.mxu0 %v839
    %1303 = vmatprep.subr.bf16.mxu0 0
    %1304 = vmatpush1.bf16.msra.mxu0 %v836
    %1305 = vmatprep.subr.bf16.mxu0 0
    %1306 = vmatpush1.bf16.msra.mxu0 %v833
    %1307 = vmatprep.subr.bf16.mxu0 0
    %1308 = vmatpush1.bf16.msra.mxu0 %v830
    %1309 = vmatprep.subr.bf16.mxu0 0
    %1310 = vmatpush1.bf16.msra.mxu0 %v827
    %1311 = vmatprep.subr.bf16.mxu0 0
    %1312 = vmatpush2.bf16.msra.mxu0 %v872
    %1313 = vmatprep.subr.bf16.mxu0 0
    %1314 = vmatpush2.bf16.msra.mxu0 %v869
    %1315 = vmatprep.subr.bf16.mxu0 0
    %1316 = vmatpush2.bf16.msra.mxu0 %v866
    %1317 = vmatprep.subr.bf16.mxu0 0
    %1318 = vmatpush2.bf16.msra.mxu0 %v863
    %1319 = vmatprep.subr.bf16.mxu0 0
    %1320 = vmatpush2.bf16.msra.mxu0 %v860
    %1321 = vmatprep.subr.bf16.mxu0 0
    %1322 = vmatpush2.bf16.msra.mxu0 %v857
    %1323 = vmatprep.subr.bf16.mxu0 0
    %1324 = vmatpush2.bf16.msra.mxu0 %v854
    %1325 = vmatprep.subr.bf16.mxu0 0
    %1326 = vmatpush2.bf16.msra.mxu0 %v851
    %1327 = vmatprep.mubr.bf16.mxu0 %v323
    %1328 = vmatmul.mubr.bf16.gmra.mxu0 %v322
    %v1329 = vpop.f32.mrf.mxu0
    %v1330 = vadd.f32 %v296, %v1329
    %v1331 = vpop.f32.mrf.mxu0
    %v1332 = vpop.f32.mrf.mxu0
    %v1333 = vadd.f32 %v296, %v1332
    %v1334 = vpop.f32.mrf.mxu0
    %1335 = vdwg.mxu0
    %1336 = vmatprep.subr.bf16.mxu0 0
    %1337 = vmatpush1.bf16.msra.mxu0 %v896
    %1338 = vmatprep.subr.bf16.mxu0 0
    %1339 = vmatpush1.bf16.msra.mxu0 %v893
    %1340 = vmatprep.subr.bf16.mxu0 0
    %1341 = vmatpush1.bf16.msra.mxu0 %v890
    %1342 = vmatprep.subr.bf16.mxu0 0
    %1343 = vmatpush1.bf16.msra.mxu0 %v887
    %1344 = vmatprep.subr.bf16.mxu0 0
    %1345 = vmatpush1.bf16.msra.mxu0 %v884
    %1346 = vmatprep.subr.bf16.mxu0 0
    %1347 = vmatpush1.bf16.msra.mxu0 %v881
    %1348 = vmatprep.subr.bf16.mxu0 0
    %1349 = vmatpush1.bf16.msra.mxu0 %v878
    %1350 = vmatprep.subr.bf16.mxu0 0
    %1351 = vmatpush1.bf16.msra.mxu0 %v875
    %1352 = vmatprep.subr.bf16.mxu0 0
    %1353 = vmatpush2.bf16.msra.mxu0 %v920
    %1354 = vmatprep.subr.bf16.mxu0 0
    %1355 = vmatpush2.bf16.msra.mxu0 %v917
    %1356 = vmatprep.subr.bf16.mxu0 0
    %1357 = vmatpush2.bf16.msra.mxu0 %v914
    %1358 = vmatprep.subr.bf16.mxu0 0
    %1359 = vmatpush2.bf16.msra.mxu0 %v911
    %1360 = vmatprep.subr.bf16.mxu0 0
    %1361 = vmatpush2.bf16.msra.mxu0 %v908
    %1362 = vmatprep.subr.bf16.mxu0 0
    %1363 = vmatpush2.bf16.msra.mxu0 %v905
    %1364 = vmatprep.subr.bf16.mxu0 0
    %1365 = vmatpush2.bf16.msra.mxu0 %v902
    %1366 = vmatprep.subr.bf16.mxu0 0
    %1367 = vmatpush2.bf16.msra.mxu0 %v899
    %1368 = vmatprep.mubr.bf16.mxu0 %v325
    %1369 = vmatmul.mubr.bf16.gmra.mxu0 %v324
    %v1370 = vpop.f32.mrf.mxu0
    %v1371 = vadd.f32 %v1330, %v1370
    %v1372 = vpop.f32.mrf.mxu0
    %v1373 = vpop.f32.mrf.mxu0
    %v1374 = vadd.f32 %v1333, %v1373
    %v1375 = vpop.f32.mrf.mxu0
    %1376 = vdwg.mxu0
    %1377 = vmatprep.subr.bf16.mxu0 0
    %1378 = vmatpush1.bf16.msra.mxu0 %v944
    %1379 = vmatprep.subr.bf16.mxu0 0
    %1380 = vmatpush1.bf16.msra.mxu0 %v941
    %1381 = vmatprep.subr.bf16.mxu0 0
    %1382 = vmatpush1.bf16.msra.mxu0 %v938
    %1383 = vmatprep.subr.bf16.mxu0 0
    %1384 = vmatpush1.bf16.msra.mxu0 %v935
    %1385 = vmatprep.subr.bf16.mxu0 0
    %1386 = vmatpush1.bf16.msra.mxu0 %v932
    %1387 = vmatprep.subr.bf16.mxu0 0
    %1388 = vmatpush1.bf16.msra.mxu0 %v929
    %1389 = vmatprep.subr.bf16.mxu0 0
    %1390 = vmatpush1.bf16.msra.mxu0 %v926
    %1391 = vmatprep.subr.bf16.mxu0 0
    %1392 = vmatpush1.bf16.msra.mxu0 %v923
    %1393 = vmatprep.subr.bf16.mxu0 0
    %1394 = vmatpush2.bf16.msra.mxu0 %v968
    %1395 = vmatprep.subr.bf16.mxu0 0
    %1396 = vmatpush2.bf16.msra.mxu0 %v965
    %1397 = vmatprep.subr.bf16.mxu0 0
    %1398 = vmatpush2.bf16.msra.mxu0 %v962
    %1399 = vmatprep.subr.bf16.mxu0 0
    %1400 = vmatpush2.bf16.msra.mxu0 %v959
    %1401 = vmatprep.subr.bf16.mxu0 0
    %1402 = vmatpush2.bf16.msra.mxu0 %v956
    %1403 = vmatprep.subr.bf16.mxu0 0
    %1404 = vmatpush2.bf16.msra.mxu0 %v953
    %1405 = vmatprep.subr.bf16.mxu0 0
    %1406 = vmatpush2.bf16.msra.mxu0 %v950
    %1407 = vmatprep.subr.bf16.mxu0 0
    %1408 = vmatpush2.bf16.msra.mxu0 %v947
    %1409 = vmatprep.mubr.bf16.mxu0 %v327
    %1410 = vmatmul.mubr.bf16.gmra.mxu0 %v326
    %v1411 = vpop.f32.mrf.mxu0
    %v1412 = vadd.f32 %v1371, %v1411
    %v1413 = vpop.f32.mrf.mxu0
    %v1414 = vpop.f32.mrf.mxu0
    %v1415 = vadd.f32 %v1374, %v1414
    %v1416 = vpop.f32.mrf.mxu0
    %1417 = vdwg.mxu0
    %1418 = vmatprep.subr.bf16.mxu0 0
    %1419 = vmatpush1.bf16.msra.mxu0 0
    %1420 = vmatprep.subr.bf16.mxu0 0
    %1421 = vmatpush1.bf16.msra.mxu0 0
    %1422 = vmatprep.subr.bf16.mxu0 0
    %1423 = vmatpush1.bf16.msra.mxu0 0
    %1424 = vmatprep.subr.bf16.mxu0 0
    %1425 = vmatpush1.bf16.msra.mxu0 0
    %1426 = vmatprep.subr.bf16.mxu0 0
    %1427 = vmatpush1.bf16.msra.mxu0 0
    %1428 = vmatprep.subr.bf16.mxu0 0
    %1429 = vmatpush1.bf16.msra.mxu0 0
    %1430 = vmatprep.subr.bf16.mxu0 0
    %1431 = vmatpush1.bf16.msra.mxu0 0
    %1432 = vmatprep.subr.bf16.mxu0 0
    %1433 = vmatpush1.bf16.msra.mxu0 %v971
    %1434 = vmatprep.subr.bf16.mxu0 0
    %1435 = vmatpush2.bf16.msra.mxu0 0
    %1436 = vmatprep.subr.bf16.mxu0 0
    %1437 = vmatpush2.bf16.msra.mxu0 0
    %1438 = vmatprep.subr.bf16.mxu0 0
    %1439 = vmatpush2.bf16.msra.mxu0 0
    %1440 = vmatprep.subr.bf16.mxu0 0
    %1441 = vmatpush2.bf16.msra.mxu0 0
    %1442 = vmatprep.subr.bf16.mxu0 0
    %1443 = vmatpush2.bf16.msra.mxu0 0
    %1444 = vmatprep.subr.bf16.mxu0 0
    %1445 = vmatpush2.bf16.msra.mxu0 0
    %1446 = vmatprep.subr.bf16.mxu0 0
    %1447 = vmatpush2.bf16.msra.mxu0 0
    %1448 = vmatprep.subr.bf16.mxu0 0
    %1449 = vmatpush2.bf16.msra.mxu0 0
    %1450 = vmatprep.mubr.bf16.mxu0 0
    %1451 = vmatmul.mubr.bf16.gmra.mxu0 %v1121
    %v1452 = vpop.f32.mrf.mxu0
    %v1453 = vadd.f32 %v1412, %v1452
    %v1454 = vpop.f32.mrf.mxu0
    %v1455 = vpop.f32.mrf.mxu0
    %v1456 = vadd.f32 %v1415, %v1455
    %v1457 = vpop.f32.mrf.mxu0
    %1458 = vdwg.mxu0
    %v1459 = vmax.f32 %v1287, 0.0
    %v1460 = vmax.f32 %v1289, 0.0
    %v1461 = vmax.f32 %v1453, 0.0
    %v1462 = vmax.f32 %v1291, 0.0
    %v1463 = vmax.f32 %v1293, 0.0
    %v1464 = vmax.f32 %v1456, 0.0
    %v1465 = vpack.c.bf16 %v1462, %v1459
    %v1466 = vpack.c.bf16 %v1463, %v1460
    %v1467 = vpack.c.bf16 %v1464, %v1461
    %v1468 = vld [vmem:[#allocation7] sm:$0xf]
    %v1469 = vld [vmem:[#allocation7 + $0x4] sm:$0xf]
    %v1470 = vld [vmem:[#allocation7 + $0x8] sm:$0xf]
    %v1471 = vld [vmem:[#allocation7 + $0xc] sm:$0xf]
    %v1472 = vld [vmem:[#allocation7 + $0x10] sm:$0xf]
    %v1473 = vld [vmem:[#allocation7 + $0x14] sm:$0xf]
    %v1474 = vld [vmem:[#allocation7 + $0x18] sm:$0xf]
    %v1475 = vld [vmem:[#allocation7 + $0x1c] sm:$0xf]
    %v1476 = vld [vmem:[#allocation7 + $0x20] sm:$0xf]
    %v1477 = vld [vmem:[#allocation7 + $0x24] sm:$0xf]
    %v1478 = vld [vmem:[#allocation7 + $0x28] sm:$0xf]
    %v1479 = vld [vmem:[#allocation7 + $0x2c] sm:$0xf]
    %v1480 = vld [vmem:[#allocation7 + $0x30] sm:$0xf]
    %v1481 = vld [vmem:[#allocation7 + $0x34] sm:$0xf]
    %v1482 = vld [vmem:[#allocation7 + $0x38] sm:$0xf]
    %v1483 = vld [vmem:[#allocation7 + $0x3c] sm:$0xf]
    %v1484 = vld [vmem:[#allocation7 + $0x40] sm:$0xf]
    %v1485 = vld [vmem:[#allocation7 + $0x44] sm:$0xf]
    %v1486 = vld [vmem:[#allocation7 + $0x48] sm:$0xf]
    %v1487 = vld [vmem:[#allocation7 + $0x4c] sm:$0xf]
    %v1488 = vld [vmem:[#allocation7 + $0x50] sm:$0xf]
    %v1489 = vld [vmem:[#allocation7 + $0x54] sm:$0xf]
    %v1490 = vld [vmem:[#allocation7 + $0x58] sm:$0xf]
    %v1491 = vld [vmem:[#allocation7 + $0x5c] sm:$0xf]
    %v1492 = vld [vmem:[#allocation7 + $0x60] sm:$0xf]
    %v1493 = vld [vmem:[#allocation7 + $0x64] sm:$0xf]
    %v1494 = vld [vmem:[#allocation7 + $0x68] sm:$0xf]
    %v1495 = vld [vmem:[#allocation7 + $0x6c] sm:$0xf]
    %v1496 = vld [vmem:[#allocation7 + $0x70] sm:$0xf]
    %v1497 = vld [vmem:[#allocation7 + $0x74] sm:$0xf]
    %v1498 = vld [vmem:[#allocation7 + $0x78] sm:$0xf]
    %v1499 = vld [vmem:[#allocation7 + $0x7c] sm:$0xf]
    %v1500 = vld [vmem:[#allocation7 + $0x80] sm:$0xf]
    %v1501 = vld [vmem:[#allocation7 + $0x84] sm:$0xf]
    %v1502 = vld [vmem:[#allocation7 + $0x88] sm:$0xf]
    %v1503 = vld [vmem:[#allocation7 + $0x8c] sm:$0xf]
    %v1504 = vld [vmem:[#allocation7 + $0x90] sm:$0xf]
    %v1505 = vld [vmem:[#allocation7 + $0x94] sm:$0xf]
    %v1506 = vld [vmem:[#allocation7 + $0x98] sm:$0xf]
    %v1507 = vld [vmem:[#allocation7 + $0x9c] sm:$0xf]
    %v1508 = vld [vmem:[#allocation7 + $0xa0] sm:$0xf]
    %v1509 = vld [vmem:[#allocation7 + $0xa4] sm:$0xf]
    %v1510 = vld [vmem:[#allocation7 + $0xa8] sm:$0xf]
    %v1511 = vld [vmem:[#allocation7 + $0xac] sm:$0xf]
    %v1512 = vld [vmem:[#allocation7 + $0xb0] sm:$0xf]
    %v1513 = vld [vmem:[#allocation7 + $0xb4] sm:$0xf]
    %v1514 = vld [vmem:[#allocation7 + $0xb8] sm:$0xf]
    %v1515 = vld [vmem:[#allocation7 + $0xbc] sm:$0xf]
    %v1517 = vlaneseq
    %v1518 = vshrl.u32 %v1517, 7
    %v1519 = vsub.s32 0, %v1518
    %v1520 = vrot.slane %v86, %v1519
    %v1570 = vunpack.c.l.b16 %v1468
    %v1571 = vunpack.c.l.b16 %v1469
    %v1572 = vunpack.c.l.b16 %v1470
    %v1573 = vunpack.c.l.b16 %v1471
    %v1574 = vunpack.c.l.b16 %v1472
    %v1575 = vunpack.c.l.b16 %v1473
    %v1576 = vunpack.c.l.b16 %v1474
    %v1577 = vunpack.c.l.b16 %v1475
    %v1578 = vunpack.c.l.b16 %v1476
    %v1579 = vunpack.c.l.b16 %v1477
    %v1580 = vunpack.c.l.b16 %v1478
    %v1581 = vunpack.c.l.b16 %v1479
    %v1582 = vunpack.c.l.b16 %v1480
    %v1583 = vunpack.c.l.b16 %v1481
    %v1584 = vunpack.c.l.b16 %v1482
    %v1585 = vunpack.c.l.b16 %v1483
    %v1586 = vunpack.c.l.b16 %v1484
    %v1587 = vunpack.c.l.b16 %v1485
    %v1588 = vunpack.c.l.b16 %v1486
    %v1589 = vunpack.c.l.b16 %v1487
    %v1590 = vunpack.c.l.b16 %v1488
    %v1591 = vunpack.c.l.b16 %v1489
    %v1592 = vunpack.c.l.b16 %v1490
    %v1593 = vunpack.c.l.b16 %v1491
    %v1594 = vunpack.c.l.b16 %v1492
    %v1595 = vunpack.c.l.b16 %v1493
    %v1596 = vunpack.c.l.b16 %v1494
    %v1597 = vunpack.c.l.b16 %v1495
    %v1598 = vunpack.c.l.b16 %v1496
    %v1599 = vunpack.c.l.b16 %v1497
    %v1600 = vunpack.c.l.b16 %v1498
    %v1601 = vunpack.c.l.b16 %v1499
    %v1602 = vunpack.c.l.b16 %v1500
    %v1603 = vunpack.c.l.b16 %v1501
    %v1604 = vunpack.c.l.b16 %v1502
    %v1605 = vunpack.c.l.b16 %v1503
    %v1606 = vunpack.c.l.b16 %v1504
    %v1607 = vunpack.c.l.b16 %v1505
    %v1608 = vunpack.c.l.b16 %v1506
    %v1609 = vunpack.c.l.b16 %v1507
    %v1610 = vunpack.c.l.b16 %v1508
    %v1611 = vunpack.c.l.b16 %v1509
    %v1612 = vunpack.c.l.b16 %v1510
    %v1613 = vunpack.c.l.b16 %v1511
    %v1614 = vunpack.c.l.b16 %v1512
    %v1615 = vunpack.c.l.b16 %v1513
    %v1616 = vunpack.c.l.b16 %v1514
    %v1617 = vunpack.c.l.b16 %v1515
    %v1618 = vpack.c.b16 %v1571, %v1570
    %v1619 = vpack.c.b16 %v1573, %v1572
    %v1620 = vpack.c.b16 %v1575, %v1574
    %v1621 = vpack.c.b16 %v1577, %v1576
    %v1622 = vpack.c.b16 %v1579, %v1578
    %v1623 = vpack.c.b16 %v1581, %v1580
    %v1624 = vpack.c.b16 %v1583, %v1582
    %v1625 = vpack.c.b16 %v1585, %v1584
    %v1626 = vpack.c.b16 %v1587, %v1586
    %v1627 = vpack.c.b16 %v1589, %v1588
    %v1628 = vpack.c.b16 %v1591, %v1590
    %v1629 = vpack.c.b16 %v1593, %v1592
    %v1630 = vpack.c.b16 %v1595, %v1594
    %v1631 = vpack.c.b16 %v1597, %v1596
    %v1632 = vpack.c.b16 %v1599, %v1598
    %v1633 = vpack.c.b16 %v1601, %v1600
    %v1634 = vpack.c.b16 %v1603, %v1602
    %v1635 = vpack.c.b16 %v1605, %v1604
    %v1636 = vpack.c.b16 %v1607, %v1606
    %v1637 = vpack.c.b16 %v1609, %v1608
    %v1638 = vpack.c.b16 %v1611, %v1610
    %v1639 = vpack.c.b16 %v1613, %v1612
    %v1640 = vpack.c.b16 %v1615, %v1614
    %v1641 = vpack.c.b16 %v1617, %v1616
    %1666 = vmatprep.subr.bf16.mxu0 0
    %1667 = vmatpush1.bf16.msra.mxu0 %v1625
    %1668 = vmatprep.subr.bf16.mxu0 0
    %1669 = vmatpush1.bf16.msra.mxu0 %v1624
    %1670 = vmatprep.subr.bf16.mxu0 0
    %1671 = vmatpush1.bf16.msra.mxu0 %v1623
    %1672 = vmatprep.subr.bf16.mxu0 0
    %1673 = vmatpush1.bf16.msra.mxu0 %v1622
    %1674 = vmatprep.subr.bf16.mxu0 0
    %1675 = vmatpush1.bf16.msra.mxu0 %v1621
    %1676 = vmatprep.subr.bf16.mxu0 0
    %1677 = vmatpush1.bf16.msra.mxu0 %v1620
    %1678 = vmatprep.subr.bf16.mxu0 0
    %1679 = vmatpush1.bf16.msra.mxu0 %v1619
    %1680 = vmatprep.subr.bf16.mxu0 0
    %1681 = vmatpush1.bf16.msra.mxu0 %v1618
    %1682 = vmatprep.subr.bf16.mxu0 0
    %1683 = vmatpush2.bf16.msra.mxu0 %v1633
    %1684 = vmatprep.subr.bf16.mxu0 0
    %1685 = vmatpush2.bf16.msra.mxu0 %v1632
    %1686 = vmatprep.subr.bf16.mxu0 0
    %1687 = vmatpush2.bf16.msra.mxu0 %v1631
    %1688 = vmatprep.subr.bf16.mxu0 0
    %1689 = vmatpush2.bf16.msra.mxu0 %v1630
    %1690 = vmatprep.subr.bf16.mxu0 0
    %1691 = vmatpush2.bf16.msra.mxu0 %v1629
    %1692 = vmatprep.subr.bf16.mxu0 0
    %1693 = vmatpush2.bf16.msra.mxu0 %v1628
    %1694 = vmatprep.subr.bf16.mxu0 0
    %1695 = vmatpush2.bf16.msra.mxu0 %v1627
    %1696 = vmatprep.subr.bf16.mxu0 0
    %1697 = vmatpush2.bf16.msra.mxu0 %v1626
    %1698 = vmatprep.mubr.bf16.mxu0 %v1466
    %1699 = vmatmul.mubr.bf16.gmra.mxu0 %v1465
    %v1700 = vpop.f32.mrf.mxu0
    %v1701 = vadd.f32 %v1520, %v1700
    %v1702 = vpop.f32.mrf.mxu0
    %v1703 = vpop.f32.mrf.mxu0
    %v1704 = vadd.f32 %v1520, %v1703
    %v1705 = vpop.f32.mrf.mxu0
    %1706 = vdwg.mxu0
    %1707 = vmatprep.subr.bf16.mxu0 0
    %1708 = vmatpush1.bf16.msra.mxu0 %v1641
    %1709 = vmatprep.subr.bf16.mxu0 0
    %1710 = vmatpush1.bf16.msra.mxu0 %v1640
    %1711 = vmatprep.subr.bf16.mxu0 0
    %1712 = vmatpush1.bf16.msra.mxu0 %v1639
    %1713 = vmatprep.subr.bf16.mxu0 0
    %1714 = vmatpush1.bf16.msra.mxu0 %v1638
    %1715 = vmatprep.subr.bf16.mxu0 0
    %1716 = vmatpush1.bf16.msra.mxu0 %v1637
    %1717 = vmatprep.subr.bf16.mxu0 0
    %1718 = vmatpush1.bf16.msra.mxu0 %v1636
    %1719 = vmatprep.subr.bf16.mxu0 0
    %1720 = vmatpush1.bf16.msra.mxu0 %v1635
    %1721 = vmatprep.subr.bf16.mxu0 0
    %1722 = vmatpush1.bf16.msra.mxu0 %v1634
    %1723 = vmatprep.subr.bf16.mxu0 0
    %1724 = vmatpush2.bf16.msra.mxu0 0
    %1725 = vmatprep.subr.bf16.mxu0 0
    %1726 = vmatpush2.bf16.msra.mxu0 0
    %1727 = vmatprep.subr.bf16.mxu0 0
    %1728 = vmatpush2.bf16.msra.mxu0 0
    %1729 = vmatprep.subr.bf16.mxu0 0
    %1730 = vmatpush2.bf16.msra.mxu0 0
    %1731 = vmatprep.subr.bf16.mxu0 0
    %1732 = vmatpush2.bf16.msra.mxu0 0
    %1733 = vmatprep.subr.bf16.mxu0 0
    %1734 = vmatpush2.bf16.msra.mxu0 0
    %1735 = vmatprep.subr.bf16.mxu0 0
    %1736 = vmatpush2.bf16.msra.mxu0 0
    %1737 = vmatprep.subr.bf16.mxu0 0
    %1738 = vmatpush2.bf16.msra.mxu0 0
    %1739 = vmatprep.mubr.bf16.mxu0 0
    %1740 = vmatmul.mubr.bf16.gmra.mxu0 %v1467
    %v1741 = vpop.f32.mrf.mxu0
    %v1742 = vadd.f32 %v1701, %v1741
    %v1743 = vpop.f32.mrf.mxu0
    %v1744 = vpop.f32.mrf.mxu0
    %v1745 = vadd.f32 %v1704, %v1744
    %v1746 = vpop.f32.mrf.mxu0
    %1747 = vdwg.mxu0
    %v1748 = vmax.f32 %v1742, 0.0
    %v1749 = vmax.f32 %v1745, 0.0
    %v1750 = vpack.c.bf16 %v1749, %v1748
    %v1751 = vld [vmem:[#allocation8] sm:$0xf]
    %v1752 = vld [vmem:[#allocation8 + $0x4] sm:$0xf]
    %v1753 = vld [vmem:[#allocation8 + $0x8] sm:$0xf]
    %v1754 = vld [vmem:[#allocation8 + $0xc] sm:$0xf]
    %v1755 = vld [vmem:[#allocation8 + $0x10] sm:$0xf]
    %v1756 = vld [vmem:[#allocation8 + $0x14] sm:$0xf]
    %v1757 = vld [vmem:[#allocation8 + $0x18] sm:$0xf]
    %v1758 = vld [vmem:[#allocation8 + $0x1c] sm:$0xf]
    %v1759 = vld [vmem:[#allocation8 + $0x20] sm:$0xf]
    %v1760 = vld [vmem:[#allocation8 + $0x24] sm:$0xf]
    %v1761 = vld [vmem:[#allocation8 + $0x28] sm:$0xf]
    %v1762 = vld [vmem:[#allocation8 + $0x2c] sm:$0xf]
    %v1763 = vld [vmem:[#allocation8 + $0x30] sm:$0xf]
    %v1764 = vld [vmem:[#allocation8 + $0x34] sm:$0xf]
    %v1765 = vld [vmem:[#allocation8 + $0x38] sm:$0xf]
    %v1766 = vld [vmem:[#allocation8 + $0x3c] sm:$0xf]
    %v1768 = vlaneseq
    %v1769 = vshrl.u32 %v1768, 7
    %v1770 = vsub.s32 0, %v1769
    %v1771 = vrot.slane %v87, %v1770
    %v1789 = vunpack.c.l.b16 %v1751
    %v1790 = vunpack.c.l.b16 %v1752
    %v1791 = vunpack.c.l.b16 %v1753
    %v1792 = vunpack.c.l.b16 %v1754
    %v1793 = vunpack.c.l.b16 %v1755
    %v1794 = vunpack.c.l.b16 %v1756
    %v1795 = vunpack.c.l.b16 %v1757
    %v1796 = vunpack.c.l.b16 %v1758
    %v1797 = vunpack.c.l.b16 %v1759
    %v1798 = vunpack.c.l.b16 %v1760
    %v1799 = vunpack.c.l.b16 %v1761
    %v1800 = vunpack.c.l.b16 %v1762
    %v1801 = vunpack.c.l.b16 %v1763
    %v1802 = vunpack.c.l.b16 %v1764
    %v1803 = vunpack.c.l.b16 %v1765
    %v1804 = vunpack.c.l.b16 %v1766
    %v1805 = vpack.c.b16 %v1790, %v1789
    %v1806 = vpack.c.b16 %v1792, %v1791
    %v1807 = vpack.c.b16 %v1794, %v1793
    %v1808 = vpack.c.b16 %v1796, %v1795
    %v1809 = vpack.c.b16 %v1798, %v1797
    %v1810 = vpack.c.b16 %v1800, %v1799
    %v1811 = vpack.c.b16 %v1802, %v1801
    %v1812 = vpack.c.b16 %v1804, %v1803
    %1821 = vmatprep.subr.bf16.mxu0 0
    %1822 = vmatpush1.bf16.msra.mxu0 %v1812
    %1823 = vmatprep.subr.bf16.mxu0 0
    %1824 = vmatpush1.bf16.msra.mxu0 %v1811
    %1825 = vmatprep.subr.bf16.mxu0 0
    %1826 = vmatpush1.bf16.msra.mxu0 %v1810
    %1827 = vmatprep.subr.bf16.mxu0 0
    %1828 = vmatpush1.bf16.msra.mxu0 %v1809
    %1829 = vmatprep.subr.bf16.mxu0 0
    %1830 = vmatpush1.bf16.msra.mxu0 %v1808
    %1831 = vmatprep.subr.bf16.mxu0 0
    %1832 = vmatpush1.bf16.msra.mxu0 %v1807
    %1833 = vmatprep.subr.bf16.mxu0 0
    %1834 = vmatpush1.bf16.msra.mxu0 %v1806
    %1835 = vmatprep.subr.bf16.mxu0 0
    %1836 = vmatpush1.bf16.msra.mxu0 %v1805
    %1837 = vmatprep.subr.bf16.mxu0 0
    %1838 = vmatpush2.bf16.msra.mxu0 0
    %1839 = vmatprep.subr.bf16.mxu0 0
    %1840 = vmatpush2.bf16.msra.mxu0 0
    %1841 = vmatprep.subr.bf16.mxu0 0
    %1842 = vmatpush2.bf16.msra.mxu0 0
    %1843 = vmatprep.subr.bf16.mxu0 0
    %1844 = vmatpush2.bf16.msra.mxu0 0
    %1845 = vmatprep.subr.bf16.mxu0 0
    %1846 = vmatpush2.bf16.msra.mxu0 0
    %1847 = vmatprep.subr.bf16.mxu0 0
    %1848 = vmatpush2.bf16.msra.mxu0 0
    %1849 = vmatprep.subr.bf16.mxu0 0
    %1850 = vmatpush2.bf16.msra.mxu0 0
    %1851 = vmatprep.subr.bf16.mxu0 0
    %1852 = vmatpush2.bf16.msra.mxu0 0
    %1853 = vmatprep.mubr.bf16.mxu0 0
    %1854 = vmatmul.mubr.bf16.gmra.mxu0 %v1750
    %v1855 = vpop.f32.mrf.mxu0
    %v1856 = vadd.f32 %v1771, %v1855
    %v1857 = vpop.f32.mrf.mxu0
    %v1858 = vpop.f32.mrf.mxu0
    %v1859 = vadd.f32 %v1771, %v1858
    %v1860 = vpop.f32.mrf.mxu0
    %1861 = vdwg.mxu0
    %v1862 = vlaneseq
    %v1863 = vand.u32 %v1862, 127
    %vm1864 = vcmp.lt.s32.totalorder %v1863, 10
    %v1865 = vsel %vm1864, %v1856, -inf
    %v1866 = vsel %vm1864, %v1859, -inf
    %1867 = vmax.xlane.f32.xlu0 %v1865
    %v1868 = vpop.xlane.xlu0 %1867
    %1869 = vmax.xlane.f32.xlu0 %v1866
    %v1870 = vpop.xlane.xlu0 %1869
    %v1871 = vsub.f32 %v1865, %v1868
    %v1872 = vsub.f32 %v1866, %v1870
    %v1873 = vmul.f32 %v1871, 1.442695
    %v1874 = vpow.pop %v1873
    %v1875 = vmul.f32 %v1872, 1.442695
    %v1876 = vpow.pop %v1875
    %1877 = vadd.xlane.f32.xlu0 %v1874
    %v1878 = vpop.xlane.xlu0 %1877
    %1879 = vadd.xlane.f32.xlu0 %v1876
    %v1880 = vpop.xlane.xlu0 %1879
    %v1881 = vlog2.pop %v1878
    %v1882 = vmul.f32 %v1881, 0.6931472
    %v1883 = vlog2.pop %v1880
    %v1884 = vmul.f32 %v1883, 0.6931472
    %v1885 = vsub.f32 %v1871, %v1882
    %v1886 = vsub.f32 %v1872, %v1884
    %1887 = vst [vmem:[#allocation10] sm:$0xff] %v1885
    %1888 = vst [vmem:[#allocation10 + $0x8] sm:$0xff] %v1886
    // Predicated region
    $region38: #{tpu_custom_call.1} parent=1 // pred_check
      _
    $region39: #{tpu_custom_call.1} parent=1 // pred_check_branch
      %1890 = sbr.rel (0) target = $region41
    $region40: #{tpu_custom_call.1} parent=1 // pred_region
      %s1892 = ssub.s32 256, 256
      %1893 = vsyncadd [#allocation4], %s1892
      %s1894 = sshll.u32 [#allocation10], 4
      %s1895 = int_to_ptr.vmem [resolvable:$true] %s1894
      %1900 = dma.vmem_to_hbm [thread:$0]  %s1895, 256, %s5, [#allocation4], 128, 128, 8
    $region41: #{tpu_custom_call.1} parent=1 // pred_fallthru
      _
    // Predicated region
    $region42: #{tpu_custom_call.1} parent=1 // pred_check
      _
    $region43: #{tpu_custom_call.1} parent=1 // pred_check_branch
      %1902 = sbr.rel (0) target = $region45
    $region44: #{tpu_custom_call.1} parent=1 // pred_region
      %1903 = dma.done [#allocation4], 256
    $region45: #{tpu_custom_call.1} parent=1 // pred_fallthru
      _
    %1904 = vsyncpa [#allocation3], 1
    %1905 = vsyncpa [#allocation6], 1
    %1906 = vsyncpa [#allocation9], 1
    %1907 = vsyncpa [#allocation4], 1

</llo_original>
